<compile_context>
chip_gen: v7x
topology: tpu7x:2x2x1
jax: 0.10.0
libtpu: 0.0.40
codegen_flags: <defaults>
</compile_context>

<pallas_src>
import functools

import jax
import jax.numpy as jnp
from jax.experimental import pallas as pl
from jax.experimental.pallas import tpu as pltpu

_LANE = 128
_VMEM_CAP_BYTES = 48 * 1024 * 1024   # safe on v7x (64 MiB physical); fine on v5e/v6e


def _round_up(n, m):
    return ((n + m - 1) // m) * m


def _pick_tile(total, target):
    """Largest multiple of 128 that divides `total` (a multiple of 128) and is <= target."""
    t = max(_LANE, (min(target, total) // _LANE) * _LANE)
    while total % t:
        t -= _LANE
    return t


def _pad2(m, rows, cols, dtype):
    r, c = m.shape
    return jnp.pad(m.astype(dtype), ((0, rows - r), (0, cols - c)))


def _vmem_limit(nbytes):
    """Explicit scoped-VMEM request: measured need + headroom, capped for v7x."""
    want = int(nbytes * 1.5) + (4 << 20)
    return int(min(_VMEM_CAP_BYTES, max(32 << 20, want)))


# ---------------------------------------------------------------------------
# Kernels
# ---------------------------------------------------------------------------

def _project_kernel(x_ref, w_ref, o_ref):
    """o = X @ W  (row tile of X, full W). bf16 inputs, f32 MXU accumulation."""
    o_ref[...] = jnp.dot(
        x_ref[...], w_ref[...], preferred_element_type=jnp.float32
    ).astype(o_ref.dtype)


def _layer1_fused_kernel(a_ref, x_ref, w1_ref, b_ref, w2_ref, o_ref, acc_ref,
                         *, tile_k, x_resident):
    """o = relu(A @ (X @ W1) + b1) @ W2, K-tiled over A_hat columns.

    a_ref  : (tile_n, tile_k)          bf16  A_hat block
    x_ref  : (Np, F) resident  OR  (tile_k, F) streamed   bf16
    w1_ref : (F, H1p)                  bf16  layer-1 weight (pre-transposed)
    b_ref  : (1, H1p)                  f32   layer-1 bias
    w2_ref : (H1p, H2p)                bf16  layer-2 weight (pre-transposed)
    o_ref  : (tile_n, H2p)             bf16  fused output (H @ W2^T for this row tile)
    acc_ref: (tile_n, H1p)             f32   VMEM accumulator (never hits HBM)
    """
    k = pl.program_id(1)

    @pl.when(k == 0)
    def _():
        acc_ref[...] = jnp.zeros_like(acc_ref)

    if x_resident:
        x_blk = x_ref[pl.ds(pl.multiple_of(k * tile_k, _LANE), tile_k), :]
    else:
        x_blk = x_ref[...]

    # Recompute the layer-1 projection for this k-block (cheap; kernel is HBM-bound).
    p_blk = jnp.dot(
        x_blk, w1_ref[...], preferred_element_type=jnp.float32
    ).astype(jnp.bfloat16)
    acc_ref[...] += jnp.dot(
        a_ref[...], p_blk, preferred_element_type=jnp.float32
    )

    # Bias / ReLU / second projection only on the last reduction step.
    @pl.when(k == pl.num_programs(1) - 1)
    def _():
        h = jnp.maximum(acc_ref[...] + b_ref[...], 0.0).astype(jnp.bfloat16)
        o_ref[...] = jnp.dot(
            h, w2_ref[...], preferred_element_type=jnp.float32
        ).astype(o_ref.dtype)


def _agg_relu_project_kernel(a_ref, p_ref, b_ref, w2_ref, o_ref, acc_ref,
                             *, tile_k, p_resident):
    """o = relu(A @ P1 + b1) @ W2 (wide-feature path, P1 = X @ W1 precomputed)."""
    k = pl.program_id(1)

    @pl.when(k == 0)
    def _():
        acc_ref[...] = jnp.zeros_like(acc_ref)

    if p_resident:
        p_blk = p_ref[pl.ds(pl.multiple_of(k * tile_k, _LANE), tile_k), :]
    else:
        p_blk = p_ref[...]

    acc_ref[...] += jnp.dot(
        a_ref[...], p_blk, preferred_element_type=jnp.float32
    )

    @pl.when(k == pl.num_programs(1) - 1)
    def _():
        h = jnp.maximum(acc_ref[...] + b_ref[...], 0.0).astype(jnp.bfloat16)
        o_ref[...] = jnp.dot(
            h, w2_ref[...], preferred_element_type=jnp.float32
        ).astype(o_ref.dtype)


def _agg_bias_kernel(a_ref, p_ref, b_ref, o_ref, *, tile_k, p_resident):
    """o = A @ P + b, K-tiled; the resident f32 output block doubles as accumulator."""
    k = pl.program_id(1)

    @pl.when(k == 0)
    def _():
        o_ref[...] = jnp.zeros_like(o_ref)

    if p_resident:
        p_blk = p_ref[pl.ds(pl.multiple_of(k * tile_k, _LANE), tile_k), :]
    else:
        p_blk = p_ref[...]

    o_ref[...] += jnp.dot(
        a_ref[...], p_blk, preferred_element_type=jnp.float32
    )

    @pl.when(k == pl.num_programs(1) - 1)
    def _():
        o_ref[...] = o_ref[...] + b_ref[...]


# ---------------------------------------------------------------------------
# VMEM budget helpers (count inputs double-buffered; conservative)
# ---------------------------------------------------------------------------

def _layer1_fused_bytes(tile_n, tile_k, Np, F, H1p, H2p, x_resident):
    b = 2 * tile_n * tile_k * 2                                       # A blocks (bf16)
    b += (2 * Np * F * 2) if x_resident else (2 * tile_k * F * 2)     # X
    b += 2 * F * H1p * 2 + 2 * H1p * 4 + 2 * H1p * H2p * 2            # W1, b1, W2
    b += 2 * tile_n * H2p * 2                                         # out blocks
    b += tile_n * H1p * 4                                             # acc scratch
    return b


def _agg_relu_project_bytes(tile_n, tile_k, Np, H1p, H2p, p_resident):
    b = 2 * tile_n * tile_k * 2
    b += (2 * Np * H1p * 2) if p_resident else (2 * tile_k * H1p * 2)
    b += 2 * H1p * 4 + 2 * H1p * H2p * 2
    b += 2 * tile_n * H2p * 2
    b += tile_n * H1p * 4
    return b


def _agg_bias_bytes(tile_n, tile_k, Np, Hp, p_resident):
    b = 2 * tile_n * tile_k * 2
    b += (2 * Np * Hp * 2) if p_resident else (2 * tile_k * Hp * 2)
    b += 2 * Hp * 4
    b += 2 * tile_n * Hp * 4                                          # f32 out blocks
    return b


# ---------------------------------------------------------------------------
# pallas_call wrappers
# ---------------------------------------------------------------------------

def _project(x, w, *, tile_n):
    Np, F = x.shape
    Hp = w.shape[1]
    return pl.pallas_call(
        _project_kernel,
        out_shape=jax.ShapeDtypeStruct((Np, Hp), jnp.bfloat16),
        grid_spec=pltpu.PrefetchScalarGridSpec(
            num_scalar_prefetch=0,
            grid=(Np // tile_n,),
            in_specs=[
                pl.BlockSpec((tile_n, F), lambda i: (i, 0)),
                pl.BlockSpec((F, Hp), lambda i: (0, 0)),
            ],
            out_specs=pl.BlockSpec((tile_n, Hp), lambda i: (i, 0)),
        ),
        compiler_params=pltpu.CompilerParams(dimension_semantics=("parallel",)),
    )(x, w)


def _layer1_fused(a, x, w1, b1, w2, *, tile_n, tile_k, x_resident, vmem_bytes):
    Np = a.shape[0]
    F = x.shape[1]
    H1p = w1.shape[1]
    H2p = w2.shape[1]
    if x_resident:
        # Full-array block, constant block index -> DMA'd once, stays in VMEM.
        x_spec = pl.BlockSpec((Np, F), lambda i, k: (0, 0))
    else:
        x_spec = pl.BlockSpec((tile_k, F), lambda i, k: (k, 0))
    kernel = functools.partial(_layer1_fused_kernel, tile_k=tile_k,
                               x_resident=x_resident)
    return pl.pallas_call(
        kernel,
        out_shape=jax.ShapeDtypeStruct((Np, H2p), jnp.bfloat16),
        grid_spec=pltpu.PrefetchScalarGridSpec(
            num_scalar_prefetch=0,
            grid=(Np // tile_n, Np // tile_k),
            in_specs=[
                pl.BlockSpec((tile_n, tile_k), lambda i, k: (i, k)),
                x_spec,
                pl.BlockSpec((F, H1p), lambda i, k: (0, 0)),
                pl.BlockSpec((1, H1p), lambda i, k: (0, 0)),
                pl.BlockSpec((H1p, H2p), lambda i, k: (0, 0)),
            ],
            out_specs=pl.BlockSpec((tile_n, H2p), lambda i, k: (i, 0)),
            scratch_shapes=[pltpu.VMEM((tile_n, H1p), jnp.float32)],
        ),
        compiler_params=pltpu.CompilerParams(
            dimension_semantics=("parallel", "arbitrary"),
            vmem_limit_bytes=vmem_bytes),
    )(a, x, w1, b1, w2)


def _aggregate_relu_project(a, p, b, w2, *, tile_n, tile_k, p_resident, vmem_bytes):
    Np = a.shape[0]
    H1p = p.shape[1]
    H2p = w2.shape[1]
    if p_resident:
        p_spec = pl.BlockSpec((Np, H1p), lambda i, k: (0, 0))
    else:
        p_spec = pl.BlockSpec((tile_k, H1p), lambda i, k: (k, 0))
    kernel = functools.partial(_agg_relu_project_kernel, tile_k=tile_k,
                               p_resident=p_resident)
    return pl.pallas_call(
        kernel,
        out_shape=jax.ShapeDtypeStruct((Np, H2p), jnp.bfloat16),
        grid_spec=pltpu.PrefetchScalarGridSpec(
            num_scalar_prefetch=0,
            grid=(Np // tile_n, Np // tile_k),
            in_specs=[
                pl.BlockSpec((tile_n, tile_k), lambda i, k: (i, k)),
                p_spec,
                pl.BlockSpec((1, H1p), lambda i, k: (0, 0)),
                pl.BlockSpec((H1p, H2p), lambda i, k: (0, 0)),
            ],
            out_specs=pl.BlockSpec((tile_n, H2p), lambda i, k: (i, 0)),
            scratch_shapes=[pltpu.VMEM((tile_n, H1p), jnp.float32)],
        ),
        compiler_params=pltpu.CompilerParams(
            dimension_semantics=("parallel", "arbitrary"),
            vmem_limit_bytes=vmem_bytes),
    )(a, p, b, w2)


def _aggregate_bias(a, p, b, *, tile_n, tile_k, p_resident, vmem_bytes):
    Np = a.shape[0]
    Hp = p.shape[1]
    if p_resident:
        p_spec = pl.BlockSpec((Np, Hp), lambda i, k: (0, 0))
    else:
        p_spec = pl.BlockSpec((tile_k, Hp), lambda i, k: (k, 0))
    kernel = functools.partial(_agg_bias_kernel, tile_k=tile_k,
                               p_resident=p_resident)
    return pl.pallas_call(
        kernel,
        out_shape=jax.ShapeDtypeStruct((Np, Hp), jnp.float32),
        grid_spec=pltpu.PrefetchScalarGridSpec(
            num_scalar_prefetch=0,
            grid=(Np // tile_n, Np // tile_k),
            in_specs=[
                pl.BlockSpec((tile_n, tile_k), lambda i, k: (i, k)),
                p_spec,
                pl.BlockSpec((1, Hp), lambda i, k: (0, 0)),
            ],
            out_specs=pl.BlockSpec((tile_n, Hp), lambda i, k: (i, 0)),
        ),
        compiler_params=pltpu.CompilerParams(
            dimension_semantics=("parallel", "arbitrary"),
            vmem_limit_bytes=vmem_bytes),
    )(a, p, b)


# ---------------------------------------------------------------------------
# Forward pass
# ---------------------------------------------------------------------------

def gcn_forward(a_hat, x, params, *, tile_n=None, tile_k=None):
    """2-layer GCN forward pass (inference: dropout = identity)."""
    # TODO(synk): nn.Dropout(p=0.5) in training mode (stochastic mask + 1/(1-p)
    # scaling) is not reproduced; this implements eval-mode (identity) dropout.
    w1_t, b1, w2_t, b2 = params
    N, F = x.shape
    H1 = w1_t.shape[1]
    H2 = w2_t.shape[1]

    # Lane-dense padding of the hidden dims (128 is enough; HBM is the binding
    # unit, so do not pad to 256).  Node dim padded to a multiple of 128 so both
    # the row tile and the reduction tile over A_hat columns are (8,128)-legal.
    H1p = _round_up(H1, _LANE)
    H2p = _round_up(H2, _LANE)
    Np = _round_up(N, _LANE)

    if tile_n is None:
        tile_n = _pick_tile(Np, 512)       # node-row tile ("parallel" axis)
        if Np // tile_n < 2 and Np > _LANE:
            # Keep >= 2 steps on the parallel axis so v7x's 2 TensorCores both work.
            tile_n = _pick_tile(Np, Np // 2)
    if tile_k is None:
        tile_k = _pick_tile(Np, 2048)      # reduction tile over A_hat columns
    assert Np % tile_n == 0 and Np % tile_k == 0

    # bf16 MXU inputs (f32 accumulation inside the kernels); biases stay f32.
    # NOTE: padded A_hat rows/columns must stay exactly zero — that invariant is
    # what nulls out the (nonzero) padded rows of the hidden activations.
    a_p = _pad2(a_hat, Np, Np, jnp.bfloat16)
    x_p = _pad2(x, Np, F, jnp.bfloat16)
    w1_p = _pad2(w1_t, F, H1p, jnp.bfloat16)
    w2_p = _pad2(w2_t, H1p, H2p, jnp.bfloat16)
    b1_p = _pad2(b1.reshape(1, -1), 1, H1p, jnp.float32)
    b2_p = _pad2(b2.reshape(1, -1), 1, H2p, jnp.float32)

    # ---- Layer 1:  HW2 = relu(A @ (X @ W1) + b1) @ W2 (fused, VMEM-resident) ----
    if F <= H1p:
        # Narrow features: fuse the projection into the aggregation kernel.
        x_res = _layer1_fused_bytes(tile_n, tile_k, Np, F, H1p, H2p, True) \
            <= _VMEM_CAP_BYTES
        nbytes = _layer1_fused_bytes(tile_n, tile_k, Np, F, H1p, H2p, x_res)
        hw2 = _layer1_fused(a_p, x_p, w1_p, b1_p, w2_p,
                            tile_n=tile_n, tile_k=tile_k,
                            x_resident=x_res, vmem_bytes=_vmem_limit(nbytes))
    else:
        # Wide features: project once (X consumed exactly once), then aggregate.
        p1 = _project(x_p, w1_p, tile_n=tile_n)                        # (Np, H1p)
        p_res = _agg_relu_project_bytes(tile_n, tile_k, Np, H1p, H2p, True) \
            <= _VMEM_CAP_BYTES
        nbytes = _agg_relu_project_bytes(tile_n, tile_k, Np, H1p, H2p, p_res)
        hw2 = _aggregate_relu_project(a_p, p1, b1_p, w2_p,
                                      tile_n=tile_n, tile_k=tile_k,
                                      p_resident=p_res,
                                      vmem_bytes=_vmem_limit(nbytes))

    # ---- Layer 2:  OUT = A @ HW2 + b2 (HW2 VMEM-resident when it fits) ---------
    p_res2 = _agg_bias_bytes(tile_n, tile_k, Np, H2p, True) <= _VMEM_CAP_BYTES
    nbytes2 = _agg_bias_bytes(tile_n, tile_k, Np, H2p, p_res2)
    out = _aggregate_bias(a_p, hw2, b2_p, tile_n=tile_n, tile_k=tile_k,
                          p_resident=p_res2, vmem_bytes=_vmem_limit(nbytes2))
    return out[:N, :H2]


def init_params(key, in_features, hidden_size_1, hidden_size_2):
    """Deterministic nn.Linear-style init (uniform +/- 1/sqrt(fan_in))."""
    k1, k2, k3, k4 = jax.random.split(key, 4)

    def linear(kw, kb, fan_in, fan_out):
        bound = 1.0 / jnp.sqrt(fan_in)
        w = jax.random.uniform(kw, (fan_out, fan_in), jnp.float32, -bound, bound)
        b = jax.random.uniform(kb, (fan_out,), jnp.float32, -bound, bound)
        # W passed pre-transposed (in, out); bias as (1, out).
        return w.T, b.reshape(1, fan_out)

    w1_t, b1 = linear(k1, k2, in_features, hidden_size_1)
    w2_t, b2 = linear(k3, k4, hidden_size_1, hidden_size_2)
    return w1_t, b1, w2_t, b2


if __name__ == "__main__":
    # Small shapes: N=256 nodes, in_features=64, hidden_1=64, hidden_2=16.
    N, F, H1, H2 = 256, 64, 64, 16
    key = jax.random.PRNGKey(0)
    ka, kx, kp = jax.random.split(key, 3)

    # Symmetric row-normalized adjacency (A_hat) — deterministic synthetic graph.
    adj = (jax.random.uniform(ka, (N, N)) > 0.5).astype(jnp.float32)
    adj = jnp.maximum(adj, adj.T) + jnp.eye(N, dtype=jnp.float32)
    deg = jnp.sum(adj, axis=1, keepdims=True)
    a_hat = adj / deg

    x = jax.random.normal(kx, (N, F), dtype=jnp.float32)
    params = init_params(kp, F, H1, H2)

    # tile_k=128 forces a multi-step reduction axis (exercises the accumulator
    # init/epilogue and resident-operand dynamic slicing); tile_n defaults to 128
    # via the ">= 2 parallel steps" cap, so both grid axes have 2 steps.
    fwd = jax.jit(functools.partial(gcn_forward, tile_k=128))
    out = fwd(a_hat, x, params)
    jax.block_until_ready(out)

    # Reference in plain f32 JAX (eval-mode dropout). Kernel uses bf16 MXU inputs
    # with f32 accumulation -> compare with a correspondingly relaxed tolerance.
    w1_t, b1, w2_t, b2 = params
    ref = jnp.maximum(a_hat @ (x @ w1_t) + b1, 0.0)
    ref = a_hat @ (ref @ w2_t) + b2
    assert out.shape == (N, H2)
    assert jnp.allclose(out, ref, atol=2e-2, rtol=2e-2), \
        float(jnp.max(jnp.abs(out - ref)))

    print("KERNEL_OK")
</pallas_src>

<mosaic_0001>
module attributes {stable_mosaic.version = 11 : i64} {
  func.func @_layer1_fused_kernel(%arg0: i32, %arg1: i32, %arg2: memref<128x128xbf16, #tpu.memory_space<vmem>>, %arg3: memref<256x64xbf16, #tpu.memory_space<vmem>>, %arg4: memref<64x128xbf16, #tpu.memory_space<vmem>>, %arg5: memref<1x128xf32, #tpu.memory_space<vmem>>, %arg6: memref<128x128xbf16, #tpu.memory_space<vmem>>, %arg7: memref<128x128xbf16, #tpu.memory_space<vmem>>, %arg8: memref<128x128xf32, #tpu.memory_space<vmem>>) attributes {dimension_semantics = [#tpu.dimension_semantics<parallel>, #tpu.dimension_semantics<arbitrary>], iteration_bounds = array<i64: 2, 2>, scalar_prefetch = 0 : i64, scratch_operands = 1 : i64, tpu.core_type = #tpu.core_type<tc>, window_params = [{transform_indices = @transform_0, window_bounds = array<i64: 128, 128>}, {pipeline_mode = #tpu.pipeline_mode<synchronous>, transform_indices = @transform_1, window_bounds = array<i64: 256, 64>}, {pipeline_mode = #tpu.pipeline_mode<synchronous>, transform_indices = @transform_2, window_bounds = array<i64: 64, 128>}, {pipeline_mode = #tpu.pipeline_mode<synchronous>, transform_indices = @transform_3, window_bounds = array<i64: 1, 128>}, {pipeline_mode = #tpu.pipeline_mode<synchronous>, transform_indices = @transform_4, window_bounds = array<i64: 128, 128>}, {transform_indices = @transform_5, window_bounds = array<i64: 128, 128>}]} {
    %c0_i32 = arith.constant 0 : i32
    %0 = arith.cmpi eq, %arg1, %c0_i32 : i32
    %1 = arith.extui %0 : i1 to i32
    %c0_i32_0 = arith.constant 0 : i32
    %2 = arith.cmpi ne, %1, %c0_i32_0 : i32
    scf.if %2 {
      %cst_11 = arith.constant 0.000000e+00 : f32
      %18 = vector.broadcast %cst_11 : f32 to vector<128x128xf32>
      %c0_12 = arith.constant 0 : index
      %c0_13 = arith.constant 0 : index
      %19 = vector.load %arg8[%c0_12, %c0_13] : memref<128x128xf32, #tpu.memory_space<vmem>>, vector<128x128xf32>
      tpu.vector_store %arg8[%c0_12, %c0_13], %18 {strides = array<i32>} : memref<128x128xf32, #tpu.memory_space<vmem>>, vector<128x128xf32>,
    } else {
    }
    %c128_i32 = arith.constant 128 : i32
    %3 = arith.muli %arg1, %c128_i32 : i32
    %4 = tpu.assume_multiple %3, 128 : i32
    %5 = arith.index_cast %4 : i32 to index
    %c0 = arith.constant 0 : index
    %6 = vector.load %arg3[%5, %c0] : memref<256x64xbf16, #tpu.memory_space<vmem>>, vector<128x64xbf16>
    %c0_1 = arith.constant 0 : index
    %c0_2 = arith.constant 0 : index
    %7 = vector.load %arg4[%c0_1, %c0_2] : memref<64x128xbf16, #tpu.memory_space<vmem>>, vector<64x128xbf16>
    %cst = arith.constant dense<0.000000e+00> : vector<128x128xf32>
    %8 = tpu.matmul %6, %7, %cst {dimension_numbers = #tpu.dot_dimension_numbers<[1], [0], [0], [1], [0, 0, 1, 1], [], []>} : vector<128x64xbf16>, vector<64x128xbf16>, vector<128x128xf32> -> vector<128x128xf32>
    %9 = arith.truncf %8 : vector<128x128xf32> to vector<128x128xbf16>
    %c0_3 = arith.constant 0 : index
    %c0_4 = arith.constant 0 : index
    %10 = vector.load %arg8[%c0_3, %c0_4] : memref<128x128xf32, #tpu.memory_space<vmem>>, vector<128x128xf32>
    %c0_5 = arith.constant 0 : index
    %c0_6 = arith.constant 0 : index
    %11 = vector.load %arg2[%c0_5, %c0_6] : memref<128x128xbf16, #tpu.memory_space<vmem>>, vector<128x128xbf16>
    %cst_7 = arith.constant dense<0.000000e+00> : vector<128x128xf32>
    %12 = tpu.matmul %11, %9, %cst_7 {dimension_numbers = #tpu.dot_dimension_numbers<[1], [0], [0], [1], [0, 0, 1, 1], [], []>} : vector<128x128xbf16>, vector<128x128xbf16>, vector<128x128xf32> -> vector<128x128xf32>
    %13 = arith.addf %10, %12 : vector<128x128xf32>
    %c0_8 = arith.constant 0 : index
    %c0_9 = arith.constant 0 : index
    %14 = vector.load %arg8[%c0_8, %c0_9] : memref<128x128xf32, #tpu.memory_space<vmem>>, vector<128x128xf32>
    tpu.vector_store %arg8[%c0_8, %c0_9], %13 {strides = array<i32>} : memref<128x128xf32, #tpu.memory_space<vmem>>, vector<128x128xf32>,
    %c1_i32 = arith.constant 1 : i32
    %15 = arith.cmpi eq, %arg1, %c1_i32 : i32
    %16 = arith.extui %15 : i1 to i32
    %c0_i32_10 = arith.constant 0 : i32
    %17 = arith.cmpi ne, %16, %c0_i32_10 : i32
    scf.if %17 {
      %c0_11 = arith.constant 0 : index
      %c0_12 = arith.constant 0 : index
      %18 = vector.load %arg8[%c0_11, %c0_12] : memref<128x128xf32, #tpu.memory_space<vmem>>, vector<128x128xf32>
      %c0_13 = arith.constant 0 : index
      %c0_14 = arith.constant 0 : index
      %19 = vector.load %arg5[%c0_13, %c0_14] : memref<1x128xf32, #tpu.memory_space<vmem>>, vector<1x128xf32>
      %20 = vector.broadcast %19 : vector<1x128xf32> to vector<128x128xf32>
      %21 = arith.addf %18, %20 : vector<128x128xf32>
      %cst_15 = arith.constant 0.000000e+00 : f32
      %22 = vector.broadcast %cst_15 : f32 to vector<128x128xf32>
      %23 = arith.maximumf %21, %22 : vector<128x128xf32>
      %24 = arith.truncf %23 : vector<128x128xf32> to vector<128x128xbf16>
      %c0_16 = arith.constant 0 : index
      %c0_17 = arith.constant 0 : index
      %25 = vector.load %arg6[%c0_16, %c0_17] : memref<128x128xbf16, #tpu.memory_space<vmem>>, vector<128x128xbf16>
      %cst_18 = arith.constant dense<0.000000e+00> : vector<128x128xf32>
      %26 = tpu.matmul %24, %25, %cst_18 {dimension_numbers = #tpu.dot_dimension_numbers<[1], [0], [0], [1], [0, 0, 1, 1], [], []>} : vector<128x128xbf16>, vector<128x128xbf16>, vector<128x128xf32> -> vector<128x128xf32>
      %27 = arith.truncf %26 : vector<128x128xf32> to vector<128x128xbf16>
      %c0_19 = arith.constant 0 : index
      %c0_20 = arith.constant 0 : index
      %28 = vector.load %arg7[%c0_19, %c0_20] : memref<128x128xbf16, #tpu.memory_space<vmem>>, vector<128x128xbf16>
      tpu.vector_store %arg7[%c0_19, %c0_20], %27 {strides = array<i32>} : memref<128x128xbf16, #tpu.memory_space<vmem>>, vector<128x128xbf16>,
    } else {
    }
    return
  }
  func.func @transform_0(%arg0: i32, %arg1: i32) -> (i32, i32) {
    %c0_i32 = arith.constant 0 : i32
    return %arg0, %arg1 : i32, i32
  }
  func.func @transform_1(%arg0: i32, %arg1: i32) -> (i32, i32) {
    %c0_i32 = arith.constant 0 : i32
    %c0_i32_0 = arith.constant 0 : i32
    %c0_i32_1 = arith.constant 0 : i32
    return %c0_i32, %c0_i32_0 : i32, i32
  }
  func.func @transform_2(%arg0: i32, %arg1: i32) -> (i32, i32) {
    %c0_i32 = arith.constant 0 : i32
    %c0_i32_0 = arith.constant 0 : i32
    %c0_i32_1 = arith.constant 0 : i32
    return %c0_i32, %c0_i32_0 : i32, i32
  }
  func.func @transform_3(%arg0: i32, %arg1: i32) -> (i32, i32) {
    %c0_i32 = arith.constant 0 : i32
    %c0_i32_0 = arith.constant 0 : i32
    %c0_i32_1 = arith.constant 0 : i32
    return %c0_i32, %c0_i32_0 : i32, i32
  }
  func.func @transform_4(%arg0: i32, %arg1: i32) -> (i32, i32) {
    %c0_i32 = arith.constant 0 : i32
    %c0_i32_0 = arith.constant 0 : i32
    %c0_i32_1 = arith.constant 0 : i32
    return %c0_i32, %c0_i32_0 : i32, i32
  }
  func.func @transform_5(%arg0: i32, %arg1: i32) -> (i32, i32) {
    %c0_i32 = arith.constant 0 : i32
    %c0_i32_0 = arith.constant 0 : i32
    return %arg0, %c0_i32 : i32, i32
  }
}

module attributes {stable_mosaic.version = 11 : i64} {
  func.func @_agg_bias_kernel(%arg0: i32, %arg1: i32, %arg2: memref<128x128xbf16, #tpu.memory_space<vmem>>, %arg3: memref<256x128xbf16, #tpu.memory_space<vmem>>, %arg4: memref<1x128xf32, #tpu.memory_space<vmem>>, %arg5: memref<128x128xf32, #tpu.memory_space<vmem>>) attributes {dimension_semantics = [#tpu.dimension_semantics<parallel>, #tpu.dimension_semantics<arbitrary>], iteration_bounds = array<i64: 2, 2>, scalar_prefetch = 0 : i64, scratch_operands = 0 : i64, tpu.core_type = #tpu.core_type<tc>, window_params = [{transform_indices = @transform_0, window_bounds = array<i64: 128, 128>}, {pipeline_mode = #tpu.pipeline_mode<synchronous>, transform_indices = @transform_1, window_bounds = array<i64: 256, 128>}, {pipeline_mode = #tpu.pipeline_mode<synchronous>, transform_indices = @transform_2, window_bounds = array<i64: 1, 128>}, {transform_indices = @transform_3, window_bounds = array<i64: 128, 128>}]} {
    %c0_i32 = arith.constant 0 : i32
    %0 = arith.cmpi eq, %arg1, %c0_i32 : i32
    %1 = arith.extui %0 : i1 to i32
    %c0_i32_0 = arith.constant 0 : i32
    %2 = arith.cmpi ne, %1, %c0_i32_0 : i32
    scf.if %2 {
      %cst_8 = arith.constant 0.000000e+00 : f32
      %15 = vector.broadcast %cst_8 : f32 to vector<128x128xf32>
      %c0_9 = arith.constant 0 : index
      %c0_10 = arith.constant 0 : index
      %16 = vector.load %arg5[%c0_9, %c0_10] : memref<128x128xf32, #tpu.memory_space<vmem>>, vector<128x128xf32>
      tpu.vector_store %arg5[%c0_9, %c0_10], %15 {strides = array<i32>} : memref<128x128xf32, #tpu.memory_space<vmem>>, vector<128x128xf32>,
    } else {
    }
    %c128_i32 = arith.constant 128 : i32
    %3 = arith.muli %arg1, %c128_i32 : i32
    %4 = tpu.assume_multiple %3, 128 : i32
    %5 = arith.index_cast %4 : i32 to index
    %c0 = arith.constant 0 : index
    %6 = vector.load %arg3[%5, %c0] : memref<256x128xbf16, #tpu.memory_space<vmem>>, vector<128x128xbf16>
    %c0_1 = arith.constant 0 : index
    %c0_2 = arith.constant 0 : index
    %7 = vector.load %arg5[%c0_1, %c0_2] : memref<128x128xf32, #tpu.memory_space<vmem>>, vector<128x128xf32>
    %c0_3 = arith.constant 0 : index
    %c0_4 = arith.constant 0 : index
    %8 = vector.load %arg2[%c0_3, %c0_4] : memref<128x128xbf16, #tpu.memory_space<vmem>>, vector<128x128xbf16>
    %cst = arith.constant dense<0.000000e+00> : vector<128x128xf32>
    %9 = tpu.matmul %8, %6, %cst {dimension_numbers = #tpu.dot_dimension_numbers<[1], [0], [0], [1], [0, 0, 1, 1], [], []>} : vector<128x128xbf16>, vector<128x128xbf16>, vector<128x128xf32> -> vector<128x128xf32>
    %10 = arith.addf %7, %9 : vector<128x128xf32>
    %c0_5 = arith.constant 0 : index
    %c0_6 = arith.constant 0 : index
    %11 = vector.load %arg5[%c0_5, %c0_6] : memref<128x128xf32, #tpu.memory_space<vmem>>, vector<128x128xf32>
    tpu.vector_store %arg5[%c0_5, %c0_6], %10 {strides = array<i32>} : memref<128x128xf32, #tpu.memory_space<vmem>>, vector<128x128xf32>,
    %c1_i32 = arith.constant 1 : i32
    %12 = arith.cmpi eq, %arg1, %c1_i32 : i32
    %13 = arith.extui %12 : i1 to i32
    %c0_i32_7 = arith.constant 0 : i32
    %14 = arith.cmpi ne, %13, %c0_i32_7 : i32
    scf.if %14 {
      %c0_8 = arith.constant 0 : index
      %c0_9 = arith.constant 0 : index
      %15 = vector.load %arg5[%c0_8, %c0_9] : memref<128x128xf32, #tpu.memory_space<vmem>>, vector<128x128xf32>
      %c0_10 = arith.constant 0 : index
      %c0_11 = arith.constant 0 : index
      %16 = vector.load %arg4[%c0_10, %c0_11] : memref<1x128xf32, #tpu.memory_space<vmem>>, vector<1x128xf32>
      %17 = vector.broadcast %16 : vector<1x128xf32> to vector<128x128xf32>
      %18 = arith.addf %15, %17 : vector<128x128xf32>
      %c0_12 = arith.constant 0 : index
      %c0_13 = arith.constant 0 : index
      %19 = vector.load %arg5[%c0_12, %c0_13] : memref<128x128xf32, #tpu.memory_space<vmem>>, vector<128x128xf32>
      tpu.vector_store %arg5[%c0_12, %c0_13], %18 {strides = array<i32>} : memref<128x128xf32, #tpu.memory_space<vmem>>, vector<128x128xf32>,
    } else {
    }
    return
  }
  func.func @transform_0(%arg0: i32, %arg1: i32) -> (i32, i32) {
    %c0_i32 = arith.constant 0 : i32
    return %arg0, %arg1 : i32, i32
  }
  func.func @transform_1(%arg0: i32, %arg1: i32) -> (i32, i32) {
    %c0_i32 = arith.constant 0 : i32
    %c0_i32_0 = arith.constant 0 : i32
    %c0_i32_1 = arith.constant 0 : i32
    return %c0_i32, %c0_i32_0 : i32, i32
  }
  func.func @transform_2(%arg0: i32, %arg1: i32) -> (i32, i32) {
    %c0_i32 = arith.constant 0 : i32
    %c0_i32_0 = arith.constant 0 : i32
    %c0_i32_1 = arith.constant 0 : i32
    return %c0_i32, %c0_i32_0 : i32, i32
  }
  func.func @transform_3(%arg0: i32, %arg1: i32) -> (i32, i32) {
    %c0_i32 = arith.constant 0 : i32
    %c0_i32_0 = arith.constant 0 : i32
    return %arg0, %c0_i32 : i32, i32
  }
}

</mosaic_0001>

<llo_original>
// kernel: gcn_forward.3
$region0: #{gcn_forward.3}
  #allocation0 [shape = 'u32[]', space=smem, size = 0x4, offset = 0x4, fixed_abs, tag = 'smem constant byte address 0x4 - core index']
  #allocation1 [shape = 'u32[144,128]{1,0:T(1,128)}', space=vmem, size = 0x12000, scoped, tag = 'internal scratch']
  %s0 = inlined_call_operand.vmem [shape: bf16[256,256], index: 0, kind: input, shape index: {}]
  %s1 = inlined_call_operand.vmem [shape: bf16[256,128], index: 1, kind: input, shape index: {}]
  %s2 = inlined_call_operand.vmem [shape: f32[1,128], index: 2, kind: input, shape index: {}]
  %s3 = inlined_call_operand.vmem [shape: f32[256,128], index: 3, kind: output, shape index: {}]
  %s4 = sld [smem:[#allocation0]]
  $region94: #{gcn_forward.3} parent=0
    _
  %s6 = ssub.s32 1, %s4
  %s7 = scalar_select 0, %s6, %s4
  $region1: #{gcn_forward.3} parent=0
    #allocation2 [shape = 'u8[65536]{0}', space=vmem, size = 0x10000, scoped, tag = 'input window, operand 0']
    loop: start=0, step=1, limit=6
    $region2: #{gcn_forward.3} parent=1 // loop_pre_header
      _
    $region3: #{gcn_forward.3} parent=1 // loop_header
      %s9 = sphi 0, %s13
      %p10 = scmp.ge.s32.totalorder %s9, 6
      %s16 = sphi 0, %s28
      %s17 = sphi 0, %s24
      %s18 = sphi 0, %s16
      %s19 = sphi 0, %s17
      %s20 = sphi 0, %s18
      %s21 = sphi 0, %s19
      %s33 = sphi 0, %s35
      %s36 = sphi 0, %s33
      %s37 = sphi 0, %s36
      %s53 = sphi 0, %s37
      %s57 = sphi 0, %s57
      %s59 = sphi 0, %s57
      %s60 = sphi 0, %s59
      %s74 = sphi 0, %s60
      %s78 = sphi 0, %s78
      %s80 = sphi 0, %s78
      %s81 = sphi 0, %s80
      %s95 = sphi 0, %s81
      %s101 = sphi 0, %s103
      %s104 = sphi 0, %s101
      %s105 = sphi 0, %s104
      %s121 = sphi 0, %s105
    $region4: #{gcn_forward.3} parent=1 // loop_header_branch
      %12 = sbr.rel (%p10) target = $region8
    $region5: #{gcn_forward.3} parent=1 // loop_body
      %s14 = ssub.s32 %s9, 1
      %s15 = ssub.s32 %s9, 2
      %s22 = sadd.s32 1, %s17
      %p23 = scmp.ge.s32.totalorder %s22, 2
      %s24 = scalar_select %p23, 0, %s22
      %s25 = sadd.s32 1, %s16
      %s26 = scalar_select %p23, %s25, %s16
      %p27 = scmp.ge.s32.totalorder %s26, 2
      %s28 = scalar_select %p27, 0, %s26
      %s29 = ssub.s32 %s16, %s28
      %s30 = ssub.s32 %s17, %s24
      %s31 = sor.u32 %s29, %s30
      %p32 = scmp.eq.s32.totalorder %s31, 0
      %s34 = sadd.s32 %s33, 1
      %s35 = scalar_select %p32, %s33, %s34
      %p38 = pneg %p32
      %p39 = scmp.eq.s32.totalorder %s9, 3
      %p40 = por %p38, %p39
      %p41 = scmp.ne.s32.totalorder %s33, %s36
      %p42 = scmp.eq.s32.totalorder %s9, 0
      %p43 = por %p41, %p42
      %p44 = scmp.ne.s32.totalorder %s33, %s36
      %p45 = scmp.eq.s32.totalorder %s14, 3
      %p46 = por %p44, %p45
      %p47 = scmp.ne.s32.totalorder %s36, %s37
      %p48 = scmp.eq.s32.totalorder %s14, 0
      %p49 = por %p47, %p48
      %p50 = scmp.ne.s32.totalorder %s36, %s37
      %p51 = scmp.eq.s32.totalorder %s15, 3
      %p52 = por %p50, %p51
      %p54 = scmp.ne.s32.totalorder %s37, %s53
      %p55 = scmp.eq.s32.totalorder %s15, 0
      %p56 = por %p54, %p55
      %s58 = sadd.s32 %s57, 1
      %p61 = scmp.eq.s32.totalorder %s9, 3
      %p62 = scmp.ne.s32.totalorder %s57, %s59
      %p63 = scmp.eq.s32.totalorder %s9, 0
      %p64 = por %p62, %p63
      %p65 = scmp.ne.s32.totalorder %s57, %s59
      %p66 = scmp.eq.s32.totalorder %s14, 3
      %p67 = por %p65, %p66
      %p68 = scmp.ne.s32.totalorder %s59, %s60
      %p69 = scmp.eq.s32.totalorder %s14, 0
      %p70 = por %p68, %p69
      %p71 = scmp.ne.s32.totalorder %s59, %s60
      %p72 = scmp.eq.s32.totalorder %s15, 3
      %p73 = por %p71, %p72
      %p75 = scmp.ne.s32.totalorder %s60, %s74
      %p76 = scmp.eq.s32.totalorder %s15, 0
      %p77 = por %p75, %p76
      %s79 = sadd.s32 %s78, 1
      %p82 = scmp.eq.s32.totalorder %s9, 3
      %p83 = scmp.ne.s32.totalorder %s78, %s80
      %p84 = scmp.eq.s32.totalorder %s9, 0
      %p85 = por %p83, %p84
      %p86 = scmp.ne.s32.totalorder %s78, %s80
      %p87 = scmp.eq.s32.totalorder %s14, 3
      %p88 = por %p86, %p87
      %p89 = scmp.ne.s32.totalorder %s80, %s81
      %p90 = scmp.eq.s32.totalorder %s14, 0
      %p91 = por %p89, %p90
      %p92 = scmp.ne.s32.totalorder %s80, %s81
      %p93 = scmp.eq.s32.totalorder %s15, 3
      %p94 = por %p92, %p93
      %p96 = scmp.ne.s32.totalorder %s81, %s95
      %p97 = scmp.eq.s32.totalorder %s15, 0
      %p98 = por %p96, %p97
      %s99 = ssub.s32 %s16, %s28
      %p100 = scmp.eq.s32.totalorder %s99, 0
      %s102 = sadd.s32 %s101, 1
      %s103 = scalar_select %p100, %s101, %s102
      %p106 = pneg %p100
      %p107 = scmp.eq.s32.totalorder %s9, 3
      %p108 = por %p106, %p107
      %p109 = scmp.ne.s32.totalorder %s101, %s104
      %p110 = scmp.eq.s32.totalorder %s9, 0
      %p111 = por %p109, %p110
      %p112 = scmp.ne.s32.totalorder %s101, %s104
      %p113 = scmp.eq.s32.totalorder %s14, 3
      %p114 = por %p112, %p113
      %p115 = scmp.ne.s32.totalorder %s104, %s105
      %p116 = scmp.eq.s32.totalorder %s14, 0
      %p117 = por %p115, %p116
      %p118 = scmp.ne.s32.totalorder %s104, %s105
      %p119 = scmp.eq.s32.totalorder %s15, 3
      %p120 = por %p118, %p119
      %p122 = scmp.ne.s32.totalorder %s105, %s121
      %p123 = scmp.eq.s32.totalorder %s15, 0
      %p124 = por %p122, %p123
      %p125 = scmp.le.s32.totalorder 1, %s9
      %p126 = scmp.lt.s32.totalorder %s9, 5
      %p127 = pnand %p125, %p126
      %p128 = pneg %p127
      // Predicated region
      $region9: #{gcn_forward.3} parent=5 // pred_check
        _
      $region10: #{gcn_forward.3} parent=5 // pred_check_branch
        %130 = sbr.rel (%p127) target = $region12
      $region11: #{gcn_forward.3} parent=5 // pred_region
        %s131 = ssub.s32 %s9, 1
        // Predicated region
        $region13: #{gcn_forward.3} parent=11 // pred_check
          %p132 = pneg %p70
        $region14: #{gcn_forward.3} parent=11 // pred_check_branch
          %134 = sbr.rel (%p132) target = $region16
        $region15: #{gcn_forward.3} parent=11 // pred_region
          _
        $region16: #{gcn_forward.3} parent=11 // pred_fallthru
          _
        // Predicated region
        $region17: #{gcn_forward.3} parent=11 // pred_check
          %p135 = pneg %p91
        $region18: #{gcn_forward.3} parent=11 // pred_check_branch
          %137 = sbr.rel (%p135) target = $region20
        $region19: #{gcn_forward.3} parent=11 // pred_region
          _
        $region20: #{gcn_forward.3} parent=11 // pred_fallthru
          _
      $region12: #{gcn_forward.3} parent=5 // pred_fallthru
        _
      %p138 = scmp.lt.s32.totalorder %s9, 4
      // Predicated region
      $region21: #{gcn_forward.3} parent=5 // pred_check
        %p139 = pneg %p138
      $region22: #{gcn_forward.3} parent=5 // pred_check_branch
        %141 = sbr.rel (%p139) target = $region24
      $region23: #{gcn_forward.3} parent=5 // pred_region
        // Predicated region
        $region25: #{gcn_forward.3} parent=23 // pred_check
          %p142 = pneg %p43
        $region26: #{gcn_forward.3} parent=23 // pred_check_branch
          %144 = sbr.rel (%p142) target = $region28
        $region27: #{gcn_forward.3} parent=23 // pred_region
          %s145 = sand.u32 %s33, 1
          %s146 = sand.u32 %s33, 1
          %s147 = smul.addr %s146, 64
          %s148 = scalar_lea.vmem [#allocation2], %s147
          %s149 = smul.u32 16, %s16
          %s150 = smul.addr %s149, 2
          %s151 = sadd.s32 %s17, %s150
          %s152 = smul.addr %s151, 4
          %s153 = scalar_lea.vmem %s0, %s152
          // Predicated region
          $region29: #{gcn_forward.3} parent=27 // pred_check
            _
          $region30: #{gcn_forward.3} parent=27 // pred_check_branch
            %155 = sbr.rel (0) target = $region32
          $region31: #{gcn_forward.3} parent=27 // pred_region
            // Predicated region
            $region33: #{gcn_forward.3} parent=31 // pred_check
              _
            $region34: #{gcn_forward.3} parent=31 // pred_check_branch
              %157 = sbr.rel target = $region36
            $region35: #{gcn_forward.3} parent=31 // pred_region
              // Predicated region
              $region48: #{gcn_forward.3} parent=35 // pred_check
                _
              $region49: #{gcn_forward.3} parent=35 // pred_check_branch
                %202 = sbr.rel (0) target = $region51
              $region50: #{gcn_forward.3} parent=35 // pred_region
                loop: start=0, step=1, limit=1
                $region52: #{gcn_forward.3} parent=50 // loop_pre_header
                  _
                $region53: #{gcn_forward.3} parent=50 // loop_header
                  %s204 = sphi 0, %s208
                  %p205 = scmp.ge.s32.totalorder %s204, 1
                  %s209 = sphi %s153, %s153
                  %s210 = sphi %s148, %s148
                $region54: #{gcn_forward.3} parent=50 // loop_header_branch
                  %207 = sbr.rel (%p205) target = $region58
                $region55: #{gcn_forward.3} parent=50 // loop_body
                  _
                $region56: #{gcn_forward.3} parent=50 // loop_footer
                  %s208 = sadd.s32 1, %s204
                $region57: #{gcn_forward.3} parent=50 // loop_footer_branch
                  %203 = sbr.rel target = $region53
                $region58: #{gcn_forward.3} parent=50 // loop_exit
                  _
                loop: start=0, step=1, limit=1
                $region59: #{gcn_forward.3} parent=50 // loop_pre_header
                  _
                $region60: #{gcn_forward.3} parent=50 // loop_header
                  %s213 = sphi 0, %s217
                  %p214 = scmp.ge.s32.totalorder %s213, 1
                  %s218 = sphi %s153, %s153
                  %s219 = sphi %s148, %s148
                $region61: #{gcn_forward.3} parent=50 // loop_header_branch
                  %216 = sbr.rel (%p214) target = $region65
                $region62: #{gcn_forward.3} parent=50 // loop_body
                  %v220 = vld [vmem:[%s218] sm:$0xf]
                  %221 = vst [vmem:[%s219] sm:$0xf] %v220
                  %v222 = vld [vmem:[%s218 + $0x8] sm:$0xf]
                  %223 = vst [vmem:[%s219 + $0x4] sm:$0xf] %v222
                  %v224 = vld [vmem:[%s218 + $0x10] sm:$0xf]
                  %225 = vst [vmem:[%s219 + $0x8] sm:$0xf] %v224
                  %v226 = vld [vmem:[%s218 + $0x18] sm:$0xf]
                  %227 = vst [vmem:[%s219 + $0xc] sm:$0xf] %v226
                  %v228 = vld [vmem:[%s218 + $0x20] sm:$0xf]
                  %229 = vst [vmem:[%s219 + $0x10] sm:$0xf] %v228
                  %v230 = vld [vmem:[%s218 + $0x28] sm:$0xf]
                  %231 = vst [vmem:[%s219 + $0x14] sm:$0xf] %v230
                  %v232 = vld [vmem:[%s218 + $0x30] sm:$0xf]
                  %233 = vst [vmem:[%s219 + $0x18] sm:$0xf] %v232
                  %v234 = vld [vmem:[%s218 + $0x38] sm:$0xf]
                  %235 = vst [vmem:[%s219 + $0x1c] sm:$0xf] %v234
                  %v236 = vld [vmem:[%s218 + $0x40] sm:$0xf]
                  %237 = vst [vmem:[%s219 + $0x20] sm:$0xf] %v236
                  %v238 = vld [vmem:[%s218 + $0x48] sm:$0xf]
                  %239 = vst [vmem:[%s219 + $0x24] sm:$0xf] %v238
                  %v240 = vld [vmem:[%s218 + $0x50] sm:$0xf]
                  %241 = vst [vmem:[%s219 + $0x28] sm:$0xf] %v240
                  %v242 = vld [vmem:[%s218 + $0x58] sm:$0xf]
                  %243 = vst [vmem:[%s219 + $0x2c] sm:$0xf] %v242
                  %v244 = vld [vmem:[%s218 + $0x60] sm:$0xf]
                  %245 = vst [vmem:[%s219 + $0x30] sm:$0xf] %v244
                  %v246 = vld [vmem:[%s218 + $0x68] sm:$0xf]
                  %247 = vst [vmem:[%s219 + $0x34] sm:$0xf] %v246
                  %v248 = vld [vmem:[%s218 + $0x70] sm:$0xf]
                  %249 = vst [vmem:[%s219 + $0x38] sm:$0xf] %v248
                  %v250 = vld [vmem:[%s218 + $0x78] sm:$0xf]
                  %251 = vst [vmem:[%s219 + $0x3c] sm:$0xf] %v250
                $region63: #{gcn_forward.3} parent=50 // loop_footer
                  %s217 = sadd.s32 1, %s213
                $region64: #{gcn_forward.3} parent=50 // loop_footer_branch
                  %212 = sbr.rel target = $region60
                $region65: #{gcn_forward.3} parent=50 // loop_exit
                  _
              $region51: #{gcn_forward.3} parent=35 // pred_fallthru
                _
            $region36: #{gcn_forward.3} parent=31 // pred_fallthru
              _
            // Predicated region
            $region37: #{gcn_forward.3} parent=31 // pred_check
              _
            $region38: #{gcn_forward.3} parent=31 // pred_check_branch
              %159 = sbr.rel (0) target = $region40
            $region39: #{gcn_forward.3} parent=31 // pred_region
              loop: start=0, step=1, limit=1
              $region41: #{gcn_forward.3} parent=39 // loop_pre_header
                _
              $region42: #{gcn_forward.3} parent=39 // loop_header
                %s162 = sphi 0, %s166
                %p163 = scmp.ge.s32.totalorder %s162, 1
                %s167 = sphi %s153, %s153
                %s168 = sphi %s148, %s148
              $region43: #{gcn_forward.3} parent=39 // loop_header_branch
                %165 = sbr.rel (%p163) target = $region47
              $region44: #{gcn_forward.3} parent=39 // loop_body
                %v169 = vld [vmem:[%s167] sm:$0xf]
                %170 = vst [vmem:[%s168] sm:$0xf] %v169
                %v171 = vld [vmem:[%s167 + $0x8] sm:$0xf]
                %172 = vst [vmem:[%s168 + $0x4] sm:$0xf] %v171
                %v173 = vld [vmem:[%s167 + $0x10] sm:$0xf]
                %174 = vst [vmem:[%s168 + $0x8] sm:$0xf] %v173
                %v175 = vld [vmem:[%s167 + $0x18] sm:$0xf]
                %176 = vst [vmem:[%s168 + $0xc] sm:$0xf] %v175
                %v177 = vld [vmem:[%s167 + $0x20] sm:$0xf]
                %178 = vst [vmem:[%s168 + $0x10] sm:$0xf] %v177
                %v179 = vld [vmem:[%s167 + $0x28] sm:$0xf]
                %180 = vst [vmem:[%s168 + $0x14] sm:$0xf] %v179
                %v181 = vld [vmem:[%s167 + $0x30] sm:$0xf]
                %182 = vst [vmem:[%s168 + $0x18] sm:$0xf] %v181
                %v183 = vld [vmem:[%s167 + $0x38] sm:$0xf]
                %184 = vst [vmem:[%s168 + $0x1c] sm:$0xf] %v183
                %v185 = vld [vmem:[%s167 + $0x40] sm:$0xf]
                %186 = vst [vmem:[%s168 + $0x20] sm:$0xf] %v185
                %v187 = vld [vmem:[%s167 + $0x48] sm:$0xf]
                %188 = vst [vmem:[%s168 + $0x24] sm:$0xf] %v187
                %v189 = vld [vmem:[%s167 + $0x50] sm:$0xf]
                %190 = vst [vmem:[%s168 + $0x28] sm:$0xf] %v189
                %v191 = vld [vmem:[%s167 + $0x58] sm:$0xf]
                %192 = vst [vmem:[%s168 + $0x2c] sm:$0xf] %v191
                %v193 = vld [vmem:[%s167 + $0x60] sm:$0xf]
                %194 = vst [vmem:[%s168 + $0x30] sm:$0xf] %v193
                %v195 = vld [vmem:[%s167 + $0x68] sm:$0xf]
                %196 = vst [vmem:[%s168 + $0x34] sm:$0xf] %v195
                %v197 = vld [vmem:[%s167 + $0x70] sm:$0xf]
                %198 = vst [vmem:[%s168 + $0x38] sm:$0xf] %v197
                %v199 = vld [vmem:[%s167 + $0x78] sm:$0xf]
                %200 = vst [vmem:[%s168 + $0x3c] sm:$0xf] %v199
              $region45: #{gcn_forward.3} parent=39 // loop_footer
                %s166 = sadd.s32 1, %s162
              $region46: #{gcn_forward.3} parent=39 // loop_footer_branch
                %161 = sbr.rel target = $region42
              $region47: #{gcn_forward.3} parent=39 // loop_exit
                _
            $region40: #{gcn_forward.3} parent=31 // pred_fallthru
              _
          $region32: #{gcn_forward.3} parent=27 // pred_fallthru
            _
          %252 = vnop
        $region28: #{gcn_forward.3} parent=23 // pred_fallthru
          _
      $region24: #{gcn_forward.3} parent=5 // pred_fallthru
        _
      %p253 = scmp.le.s32.totalorder 1, %s9
      %p254 = scmp.lt.s32.totalorder %s9, 5
      %p255 = pnand %p253, %p254
      %p256 = pneg %p255
      // Predicated region
      $region66: #{gcn_forward.3} parent=5 // pred_check
        _
      $region67: #{gcn_forward.3} parent=5 // pred_check_branch
        %258 = sbr.rel (%p255) target = $region69
      $region68: #{gcn_forward.3} parent=5 // pred_region
        %s259 = ssub.s32 %s9, 1
        %s260 = sand.u32 %s36, 1
        %s261 = sand.u32 %s36, 1
        %s262 = smul.addr %s261, 64
        %s263 = scalar_lea.vmem [#allocation2], %s262
        // Predicated region
        $region70: #{gcn_forward.3} parent=68 // pred_check
          %p264 = pneg %p49
        $region71: #{gcn_forward.3} parent=68 // pred_check_branch
          %266 = sbr.rel (%p264) target = $region73
        $region72: #{gcn_forward.3} parent=68 // pred_region
          _
        $region73: #{gcn_forward.3} parent=68 // pred_fallthru
          _
        %s267 = sand.u32 %s36, 1
        %s268 = sand.u32 %s36, 1
        %s269 = smul.addr %s268, 64
        %s270 = scalar_lea.vmem [#allocation2], %s269
        %p271 = pneg %p49
        %p272 = pneg %p46
        %p273 = pneg %p70
        %p274 = pneg %p67
        %p275 = pneg %p91
        %p276 = pneg %p88
        %p277 = pneg %p117
        %p278 = pneg %p114
        %s279 = smul.u32 16, %s18
        %p280 = scmp.lt.s32.totalorder %s279, 31
        %s281 = scalar_select %p280, %s279, 31
        %s282 = smul.addr %s281, 8
        %s283 = scalar_lea.vmem %s3, %s282
        %s284 = smul.u32 16, %s18
        %s285 = smul.u32 16, %s18
        %p286 = scmp.lt.s32.totalorder %s285, 31
        %s287 = scalar_select %p286, %s285, 31
        %s288 = smul.addr %s287, 8
        %s289 = scalar_lea.vmem %s3, %s288
        %s290 = smul.u32 16, %s18
        %p292 = scmp.eq.s32.totalorder %s19, 0
        // Predicated region
        $region74: #{gcn_forward.3} parent=68 // pred_check
          %p293 = pneg %p292
        $region75: #{gcn_forward.3} parent=68 // pred_check_branch
          %295 = sbr.rel (%p293) target = $region77
        $region76: #{gcn_forward.3} parent=68 // pred_region
          %296 = vst [vmem:[%s289] sm:$0xff] 0.0
          %297 = vst [vmem:[%s289 + $0x8] sm:$0xff] 0.0
          %298 = vst [vmem:[%s289 + $0x10] sm:$0xff] 0.0
          %299 = vst [vmem:[%s289 + $0x18] sm:$0xff] 0.0
          %300 = vst [vmem:[%s289 + $0x20] sm:$0xff] 0.0
          %301 = vst [vmem:[%s289 + $0x28] sm:$0xff] 0.0
          %302 = vst [vmem:[%s289 + $0x30] sm:$0xff] 0.0
          %303 = vst [vmem:[%s289 + $0x38] sm:$0xff] 0.0
          %304 = vst [vmem:[%s289 + $0x40] sm:$0xff] 0.0
          %305 = vst [vmem:[%s289 + $0x48] sm:$0xff] 0.0
          %306 = vst [vmem:[%s289 + $0x50] sm:$0xff] 0.0
          %307 = vst [vmem:[%s289 + $0x58] sm:$0xff] 0.0
          %308 = vst [vmem:[%s289 + $0x60] sm:$0xff] 0.0
          %309 = vst [vmem:[%s289 + $0x68] sm:$0xff] 0.0
          %310 = vst [vmem:[%s289 + $0x70] sm:$0xff] 0.0
          %311 = vst [vmem:[%s289 + $0x78] sm:$0xff] 0.0
        $region77: #{gcn_forward.3} parent=68 // pred_fallthru
          _
        %s312 = smul.u32 %s19, 128
        %s313 = sshra.s32 %s312, 3
        %s314 = sand.u32 %s312, 7
        %s315 = smul.addr %s313, 4
        %s316 = scalar_lea.vmem %s1, %s315
        %v317 = vld [vmem:[%s316] sm:$0xf]
        %v318 = vld [vmem:[%s316 + $0x4] sm:$0xf]
        %v319 = vld [vmem:[%s316 + $0x8] sm:$0xf]
        %v320 = vld [vmem:[%s316 + $0xc] sm:$0xf]
        %v321 = vld [vmem:[%s316 + $0x10] sm:$0xf]
        %v322 = vld [vmem:[%s316 + $0x14] sm:$0xf]
        %v323 = vld [vmem:[%s316 + $0x18] sm:$0xf]
        %v324 = vld [vmem:[%s316 + $0x1c] sm:$0xf]
        %v325 = vld [vmem:[%s316 + $0x20] sm:$0xf]
        %v326 = vld [vmem:[%s316 + $0x24] sm:$0xf]
        %v327 = vld [vmem:[%s316 + $0x28] sm:$0xf]
        %v328 = vld [vmem:[%s316 + $0x2c] sm:$0xf]
        %v329 = vld [vmem:[%s316 + $0x30] sm:$0xf]
        %v330 = vld [vmem:[%s316 + $0x34] sm:$0xf]
        %v331 = vld [vmem:[%s316 + $0x38] sm:$0xf]
        %v332 = vld [vmem:[%s316 + $0x3c] sm:$0xf]
        %v333 = vld [vmem:[%s289] sm:$0xff]
        %v334 = vld [vmem:[%s289 + $0x8] sm:$0xff]
        %v335 = vld [vmem:[%s289 + $0x10] sm:$0xff]
        %v336 = vld [vmem:[%s289 + $0x18] sm:$0xff]
        %v337 = vld [vmem:[%s289 + $0x20] sm:$0xff]
        %v338 = vld [vmem:[%s289 + $0x28] sm:$0xff]
        %v339 = vld [vmem:[%s289 + $0x30] sm:$0xff]
        %v340 = vld [vmem:[%s289 + $0x38] sm:$0xff]
        %v341 = vld [vmem:[%s289 + $0x40] sm:$0xff]
        %v342 = vld [vmem:[%s289 + $0x48] sm:$0xff]
        %v343 = vld [vmem:[%s289 + $0x50] sm:$0xff]
        %v344 = vld [vmem:[%s289 + $0x58] sm:$0xff]
        %v345 = vld [vmem:[%s289 + $0x60] sm:$0xff]
        %v346 = vld [vmem:[%s289 + $0x68] sm:$0xff]
        %v347 = vld [vmem:[%s289 + $0x70] sm:$0xff]
        %v348 = vld [vmem:[%s289 + $0x78] sm:$0xff]
        %v349 = vld [vmem:[%s263] sm:$0xf]
        %v350 = vld [vmem:[%s263 + $0x4] sm:$0xf]
        %v351 = vld [vmem:[%s263 + $0x8] sm:$0xf]
        %v352 = vld [vmem:[%s263 + $0xc] sm:$0xf]
        %v353 = vld [vmem:[%s263 + $0x10] sm:$0xf]
        %v354 = vld [vmem:[%s263 + $0x14] sm:$0xf]
        %v355 = vld [vmem:[%s263 + $0x18] sm:$0xf]
        %v356 = vld [vmem:[%s263 + $0x1c] sm:$0xf]
        %v357 = vld [vmem:[%s263 + $0x20] sm:$0xf]
        %v358 = vld [vmem:[%s263 + $0x24] sm:$0xf]
        %v359 = vld [vmem:[%s263 + $0x28] sm:$0xf]
        %v360 = vld [vmem:[%s263 + $0x2c] sm:$0xf]
        %v361 = vld [vmem:[%s263 + $0x30] sm:$0xf]
        %v362 = vld [vmem:[%s263 + $0x34] sm:$0xf]
        %v363 = vld [vmem:[%s263 + $0x38] sm:$0xf]
        %v364 = vld [vmem:[%s263 + $0x3c] sm:$0xf]
        %v381 = vunpack.c.l.b16 %v349
        %v382 = vunpack.c.l.b16 %v350
        %v383 = vunpack.c.l.b16 %v351
        %v384 = vunpack.c.l.b16 %v352
        %v385 = vunpack.c.l.b16 %v353
        %v386 = vunpack.c.l.b16 %v354
        %v387 = vunpack.c.l.b16 %v355
        %v388 = vunpack.c.l.b16 %v356
        %v389 = vunpack.c.l.b16 %v357
        %v390 = vunpack.c.l.b16 %v358
        %v391 = vunpack.c.l.b16 %v359
        %v392 = vunpack.c.l.b16 %v360
        %v393 = vunpack.c.l.b16 %v361
        %v394 = vunpack.c.l.b16 %v362
        %v395 = vunpack.c.l.b16 %v363
        %v396 = vunpack.c.l.b16 %v364
        %v397 = vpack.c.b16 %v382, %v381
        %v398 = vpack.c.b16 %v384, %v383
        %v399 = vpack.c.b16 %v386, %v385
        %v400 = vpack.c.b16 %v388, %v387
        %v401 = vpack.c.b16 %v390, %v389
        %v402 = vpack.c.b16 %v392, %v391
        %v403 = vpack.c.b16 %v394, %v393
        %v404 = vpack.c.b16 %v396, %v395
        %v429 = vunpack.c.l.b16 %v317
        %v430 = vunpack.c.l.b16 %v318
        %v431 = vunpack.c.l.b16 %v319
        %v432 = vunpack.c.l.b16 %v320
        %v433 = vunpack.c.l.b16 %v321
        %v434 = vunpack.c.l.b16 %v322
        %v435 = vunpack.c.l.b16 %v323
        %v436 = vunpack.c.l.b16 %v324
        %v437 = vunpack.c.l.b16 %v325
        %v438 = vunpack.c.l.b16 %v326
        %v439 = vunpack.c.l.b16 %v327
        %v440 = vunpack.c.l.b16 %v328
        %v441 = vunpack.c.l.b16 %v329
        %v442 = vunpack.c.l.b16 %v330
        %v443 = vunpack.c.l.b16 %v331
        %v444 = vunpack.c.l.b16 %v332
        %v445 = vpack.c.b16 %v430, %v429
        %v446 = vpack.c.b16 %v432, %v431
        %v447 = vpack.c.b16 %v434, %v433
        %v448 = vpack.c.b16 %v436, %v435
        %v449 = vpack.c.b16 %v438, %v437
        %v450 = vpack.c.b16 %v440, %v439
        %v451 = vpack.c.b16 %v442, %v441
        %v452 = vpack.c.b16 %v444, %v443
        %461 = vmatprep.subr.bf16.mxu0 0
        %462 = vmatpush1.bf16.msra.mxu0 %v445
        %463 = vmatprep.subr.bf16.mxu0 0
        %464 = vmatpush1.bf16.msra.mxu0 %v446
        %465 = vmatprep.subr.bf16.mxu0 0
        %466 = vmatpush1.bf16.msra.mxu0 %v447
        %467 = vmatprep.subr.bf16.mxu0 0
        %468 = vmatpush1.bf16.msra.mxu0 %v448
        %469 = vmatprep.subr.bf16.mxu0 0
        %470 = vmatpush1.bf16.msra.mxu0 %v449
        %471 = vmatprep.subr.bf16.mxu0 0
        %472 = vmatpush1.bf16.msra.mxu0 %v450
        %473 = vmatprep.subr.bf16.mxu0 0
        %474 = vmatpush1.bf16.msra.mxu0 %v451
        %475 = vmatprep.subr.bf16.mxu0 0
        %476 = vmatpush1.bf16.msra.mxu0 %v452
        %477 = vmatprep.subr.bf16.mxu0 0
        %478 = vmatpush1.bf16.msra.mxu0 0
        %479 = vmatprep.subr.bf16.mxu0 0
        %480 = vmatpush1.bf16.msra.mxu0 0
        %481 = vmatprep.subr.bf16.mxu0 0
        %482 = vmatpush1.bf16.msra.mxu0 0
        %483 = vmatprep.subr.bf16.mxu0 0
        %484 = vmatpush1.bf16.msra.mxu0 0
        %485 = vmatprep.subr.bf16.mxu0 0
        %486 = vmatpush1.bf16.msra.mxu0 0
        %487 = vmatprep.subr.bf16.mxu0 0
        %488 = vmatpush1.bf16.msra.mxu0 0
        %489 = vmatprep.subr.bf16.mxu0 0
        %490 = vmatpush1.bf16.msra.mxu0 0
        %491 = vmatprep.subr.bf16.mxu0 0
        %492 = vmatpush1.bf16.msra.mxu0 0
        %493 = vmatprep.mubr.bf16.mxu0 0
        %494 = vmatmul.mubr.bf16.gmra.mrb[0].mxu0 %v397
        %v495 = vpop.f32.mrb[0].mxu0
        %v496 = vadd.f32 0.0, %v495
        %v497 = vpop.f32.mrb[0].mxu0
        %v498 = vpop.f32.mrb[0].mxu0
        %v499 = vadd.f32 0.0, %v498
        %v500 = vpop.f32.mrb[0].mxu0
        %501 = vmatprep.mubr.bf16.mxu0 0
        %502 = vmatmul.mubr.bf16.gmra.mrb[0].mxu0 %v398
        %v503 = vpop.f32.mrb[0].mxu0
        %v504 = vadd.f32 0.0, %v503
        %v505 = vpop.f32.mrb[0].mxu0
        %v506 = vpop.f32.mrb[0].mxu0
        %v507 = vadd.f32 0.0, %v506
        %v508 = vpop.f32.mrb[0].mxu0
        %509 = vmatprep.mubr.bf16.mxu0 0
        %510 = vmatmul.mubr.bf16.gmra.mrb[0].mxu0 %v399
        %v511 = vpop.f32.mrb[0].mxu0
        %v512 = vadd.f32 0.0, %v511
        %v513 = vpop.f32.mrb[0].mxu0
        %v514 = vpop.f32.mrb[0].mxu0
        %v515 = vadd.f32 0.0, %v514
        %v516 = vpop.f32.mrb[0].mxu0
        %517 = vmatprep.mubr.bf16.mxu0 0
        %518 = vmatmul.mubr.bf16.gmra.mrb[0].mxu0 %v400
        %v519 = vpop.f32.mrb[0].mxu0
        %v520 = vadd.f32 0.0, %v519
        %v521 = vpop.f32.mrb[0].mxu0
        %v522 = vpop.f32.mrb[0].mxu0
        %v523 = vadd.f32 0.0, %v522
        %v524 = vpop.f32.mrb[0].mxu0
        %525 = vmatprep.mubr.bf16.mxu0 0
        %526 = vmatmul.mubr.bf16.gmra.mrb[0].mxu0 %v401
        %v527 = vpop.f32.mrb[0].mxu0
        %v528 = vadd.f32 0.0, %v527
        %v529 = vpop.f32.mrb[0].mxu0
        %v530 = vpop.f32.mrb[0].mxu0
        %v531 = vadd.f32 0.0, %v530
        %v532 = vpop.f32.mrb[0].mxu0
        %533 = vmatprep.mubr.bf16.mxu0 0
        %534 = vmatmul.mubr.bf16.gmra.mrb[0].mxu0 %v402
        %v535 = vpop.f32.mrb[0].mxu0
        %v536 = vadd.f32 0.0, %v535
        %v537 = vpop.f32.mrb[0].mxu0
        %v538 = vpop.f32.mrb[0].mxu0
        %v539 = vadd.f32 0.0, %v538
        %v540 = vpop.f32.mrb[0].mxu0
        %541 = vmatprep.mubr.bf16.mxu0 0
        %542 = vmatmul.mubr.bf16.gmra.mrb[0].mxu0 %v403
        %v543 = vpop.f32.mrb[0].mxu0
        %v544 = vadd.f32 0.0, %v543
        %v545 = vpop.f32.mrb[0].mxu0
        %v546 = vpop.f32.mrb[0].mxu0
        %v547 = vadd.f32 0.0, %v546
        %v548 = vpop.f32.mrb[0].mxu0
        %549 = vmatprep.mubr.bf16.mxu0 0
        %550 = vmatmul.mubr.bf16.gmra.mrb[0].mxu0 %v404
        %v551 = vpop.f32.mrb[0].mxu0
        %v552 = vadd.f32 0.0, %v551
        %v553 = vpop.f32.mrb[0].mxu0
        %v554 = vpop.f32.mrb[0].mxu0
        %v555 = vadd.f32 0.0, %v554
        %v556 = vpop.f32.mrb[0].mxu0
        %557 = vdwg.mxu0
        %v558 = vadd.f32 %v333, %v496
        %v559 = vadd.f32 %v334, %v499
        %v560 = vadd.f32 %v335, %v504
        %v561 = vadd.f32 %v336, %v507
        %v562 = vadd.f32 %v337, %v512
        %v563 = vadd.f32 %v338, %v515
        %v564 = vadd.f32 %v339, %v520
        %v565 = vadd.f32 %v340, %v523
        %v566 = vadd.f32 %v341, %v528
        %v567 = vadd.f32 %v342, %v531
        %v568 = vadd.f32 %v343, %v536
        %v569 = vadd.f32 %v344, %v539
        %v570 = vadd.f32 %v345, %v544
        %v571 = vadd.f32 %v346, %v547
        %v572 = vadd.f32 %v347, %v552
        %v573 = vadd.f32 %v348, %v555
        %574 = vst [vmem:[%s289] sm:$0xff] %v558
        %575 = vst [vmem:[%s289 + $0x8] sm:$0xff] %v559
        %576 = vst [vmem:[%s289 + $0x10] sm:$0xff] %v560
        %577 = vst [vmem:[%s289 + $0x18] sm:$0xff] %v561
        %578 = vst [vmem:[%s289 + $0x20] sm:$0xff] %v562
        %579 = vst [vmem:[%s289 + $0x28] sm:$0xff] %v563
        %580 = vst [vmem:[%s289 + $0x30] sm:$0xff] %v564
        %581 = vst [vmem:[%s289 + $0x38] sm:$0xff] %v565
        %582 = vst [vmem:[%s289 + $0x40] sm:$0xff] %v566
        %583 = vst [vmem:[%s289 + $0x48] sm:$0xff] %v567
        %584 = vst [vmem:[%s289 + $0x50] sm:$0xff] %v568
        %585 = vst [vmem:[%s289 + $0x58] sm:$0xff] %v569
        %586 = vst [vmem:[%s289 + $0x60] sm:$0xff] %v570
        %587 = vst [vmem:[%s289 + $0x68] sm:$0xff] %v571
        %588 = vst [vmem:[%s289 + $0x70] sm:$0xff] %v572
        %589 = vst [vmem:[%s289 + $0x78] sm:$0xff] %v573
        %p590 = scmp.eq.s32.totalorder %s19, 1
        // Predicated region
        $region78: #{gcn_forward.3} parent=68 // pred_check
          %p591 = pneg %p590
        $region79: #{gcn_forward.3} parent=68 // pred_check_branch
          %593 = sbr.rel (%p591) target = $region81
        $region80: #{gcn_forward.3} parent=68 // pred_region
          %v594 = vld [vmem:[%s289] sm:$0xff]
          %v595 = vld [vmem:[%s289 + $0x8] sm:$0xff]
          %v596 = vld [vmem:[%s289 + $0x10] sm:$0xff]
          %v597 = vld [vmem:[%s289 + $0x18] sm:$0xff]
          %v598 = vld [vmem:[%s289 + $0x20] sm:$0xff]
          %v599 = vld [vmem:[%s289 + $0x28] sm:$0xff]
          %v600 = vld [vmem:[%s289 + $0x30] sm:$0xff]
          %v601 = vld [vmem:[%s289 + $0x38] sm:$0xff]
          %v602 = vld [vmem:[%s289 + $0x40] sm:$0xff]
          %v603 = vld [vmem:[%s289 + $0x48] sm:$0xff]
          %v604 = vld [vmem:[%s289 + $0x50] sm:$0xff]
          %v605 = vld [vmem:[%s289 + $0x58] sm:$0xff]
          %v606 = vld [vmem:[%s289 + $0x60] sm:$0xff]
          %v607 = vld [vmem:[%s289 + $0x68] sm:$0xff]
          %v608 = vld [vmem:[%s289 + $0x70] sm:$0xff]
          %v609 = vld [vmem:[%s289 + $0x78] sm:$0xff]
          %v610 = vld [vmem:[%s2] sm:$0x1]
          %v612 = vlaneseq
          %v613 = vshrl.u32 %v612, 7
          %v614 = vsub.s32 0, %v613
          %v615 = vrot.slane %v610, %v614
          %v617 = vadd.f32 %v594, %v615
          %v618 = vadd.f32 %v595, %v615
          %v619 = vadd.f32 %v596, %v615
          %v620 = vadd.f32 %v597, %v615
          %v621 = vadd.f32 %v598, %v615
          %v622 = vadd.f32 %v599, %v615
          %v623 = vadd.f32 %v600, %v615
          %v624 = vadd.f32 %v601, %v615
          %v625 = vadd.f32 %v602, %v615
          %v626 = vadd.f32 %v603, %v615
          %v627 = vadd.f32 %v604, %v615
          %v628 = vadd.f32 %v605, %v615
          %v629 = vadd.f32 %v606, %v615
          %v630 = vadd.f32 %v607, %v615
          %v631 = vadd.f32 %v608, %v615
          %v632 = vadd.f32 %v609, %v615
          %633 = vst [vmem:[%s289] sm:$0xff] %v617
          %634 = vst [vmem:[%s289 + $0x8] sm:$0xff] %v618
          %635 = vst [vmem:[%s289 + $0x10] sm:$0xff] %v619
          %636 = vst [vmem:[%s289 + $0x18] sm:$0xff] %v620
          %637 = vst [vmem:[%s289 + $0x20] sm:$0xff] %v621
          %638 = vst [vmem:[%s289 + $0x28] sm:$0xff] %v622
          %639 = vst [vmem:[%s289 + $0x30] sm:$0xff] %v623
          %640 = vst [vmem:[%s289 + $0x38] sm:$0xff] %v624
          %641 = vst [vmem:[%s289 + $0x40] sm:$0xff] %v625
          %642 = vst [vmem:[%s289 + $0x48] sm:$0xff] %v626
          %643 = vst [vmem:[%s289 + $0x50] sm:$0xff] %v627
          %644 = vst [vmem:[%s289 + $0x58] sm:$0xff] %v628
          %645 = vst [vmem:[%s289 + $0x60] sm:$0xff] %v629
          %646 = vst [vmem:[%s289 + $0x68] sm:$0xff] %v630
          %647 = vst [vmem:[%s289 + $0x70] sm:$0xff] %v631
          %648 = vst [vmem:[%s289 + $0x78] sm:$0xff] %v632
        $region81: #{gcn_forward.3} parent=68 // pred_fallthru
          _
        %s649 = smul.u32 16, %s18
        %p650 = scmp.lt.s32.totalorder %s649, 31
        %s651 = scalar_select %p650, %s649, 31
        %s652 = smul.addr %s651, 8
        %s653 = scalar_lea.vmem %s3, %s652
        // Predicated region
        $region82: #{gcn_forward.3} parent=68 // pred_check
          %p654 = pneg %p114
        $region83: #{gcn_forward.3} parent=68 // pred_check_branch
          %656 = sbr.rel (%p654) target = $region85
        $region84: #{gcn_forward.3} parent=68 // pred_region
          %s657 = smul.u32 16, %s18
        $region85: #{gcn_forward.3} parent=68 // pred_fallthru
          _
      $region69: #{gcn_forward.3} parent=5 // pred_fallthru
        _
      %p658 = scmp.le.s32.totalorder 2, %s9
      // Predicated region
      $region86: #{gcn_forward.3} parent=5 // pred_check
        %p659 = pneg %p658
      $region87: #{gcn_forward.3} parent=5 // pred_check_branch
        %661 = sbr.rel (%p659) target = $region89
      $region88: #{gcn_forward.3} parent=5 // pred_region
        %s662 = ssub.s32 %s9, 2
        // Predicated region
        $region90: #{gcn_forward.3} parent=88 // pred_check
          %p663 = pneg %p120
        $region91: #{gcn_forward.3} parent=88 // pred_check_branch
          %665 = sbr.rel (%p663) target = $region93
        $region92: #{gcn_forward.3} parent=88 // pred_region
          %s666 = smul.u32 16, %s20
          %p667 = scmp.lt.s32.totalorder %s666, 31
          %s668 = scalar_select %p667, %s666, 31
          %s669 = smul.addr %s668, 8
          %s670 = scalar_lea.vmem %s3, %s669
        $region93: #{gcn_forward.3} parent=88 // pred_fallthru
          _
      $region89: #{gcn_forward.3} parent=5 // pred_fallthru
        _
    $region6: #{gcn_forward.3} parent=1 // loop_footer
      %s13 = sadd.s32 1, %s9
    $region7: #{gcn_forward.3} parent=1 // loop_footer_branch
      %8 = sbr.rel target = $region3
    $region8: #{gcn_forward.3} parent=1 // loop_exit
      _

// kernel: gcn_forward.2
$region0: #{gcn_forward.2}
  #allocation0 [shape = 'u32[]', space=smem, size = 0x4, offset = 0x4, fixed_abs, tag = 'smem constant byte address 0x4 - core index']
  #allocation1 [shape = 'u32[144,128]{1,0:T(1,128)}', space=vmem, size = 0x12000, scoped, tag = 'internal scratch']
  #allocation2 [shape = 'f32[128,128]{1,0:T(8,128)}', space=vmem, size = 0x10000, scoped, tag = 'scratch operand']
  %s0 = inlined_call_operand.vmem [shape: bf16[256,256], index: 0, kind: input, shape index: {}]
  %s1 = inlined_call_operand.vmem [shape: bf16[256,64], index: 1, kind: input, shape index: {}]
  %s2 = inlined_call_operand.vmem [shape: bf16[64,128], index: 2, kind: input, shape index: {}]
  %s3 = inlined_call_operand.vmem [shape: f32[1,128], index: 3, kind: input, shape index: {}]
  %s4 = inlined_call_operand.vmem [shape: bf16[128,128], index: 4, kind: input, shape index: {}]
  %s5 = inlined_call_operand.vmem [shape: bf16[256,128], index: 5, kind: output, shape index: {}]
  %s6 = sld [smem:[#allocation0]]
  $region102: #{gcn_forward.2} parent=0
    _
  %s8 = ssub.s32 1, %s6
  %s9 = scalar_select 0, %s8, %s6
  $region1: #{gcn_forward.2} parent=0
    #allocation3 [shape = 'u8[65536]{0}', space=vmem, size = 0x10000, scoped, tag = 'input window, operand 0']
    loop: start=0, step=1, limit=6
    $region2: #{gcn_forward.2} parent=1 // loop_pre_header
      _
    $region3: #{gcn_forward.2} parent=1 // loop_header
      %s11 = sphi 0, %s15
      %p12 = scmp.ge.s32.totalorder %s11, 6
      %s18 = sphi 0, %s30
      %s19 = sphi 0, %s26
      %s20 = sphi 0, %s18
      %s21 = sphi 0, %s19
      %s22 = sphi 0, %s20
      %s23 = sphi 0, %s21
      %s35 = sphi 0, %s37
      %s38 = sphi 0, %s35
      %s39 = sphi 0, %s38
      %s55 = sphi 0, %s39
      %s59 = sphi 0, %s59
      %s61 = sphi 0, %s59
      %s62 = sphi 0, %s61
      %s76 = sphi 0, %s62
      %s80 = sphi 0, %s80
      %s82 = sphi 0, %s80
      %s83 = sphi 0, %s82
      %s97 = sphi 0, %s83
      %s101 = sphi 0, %s101
      %s103 = sphi 0, %s101
      %s104 = sphi 0, %s103
      %s118 = sphi 0, %s104
      %s122 = sphi 0, %s122
      %s124 = sphi 0, %s122
      %s125 = sphi 0, %s124
      %s139 = sphi 0, %s125
      %s145 = sphi 0, %s147
      %s148 = sphi 0, %s145
      %s149 = sphi 0, %s148
      %s165 = sphi 0, %s149
    $region4: #{gcn_forward.2} parent=1 // loop_header_branch
      %14 = sbr.rel (%p12) target = $region8
    $region5: #{gcn_forward.2} parent=1 // loop_body
      %s16 = ssub.s32 %s11, 1
      %s17 = ssub.s32 %s11, 2
      %s24 = sadd.s32 1, %s19
      %p25 = scmp.ge.s32.totalorder %s24, 2
      %s26 = scalar_select %p25, 0, %s24
      %s27 = sadd.s32 1, %s18
      %s28 = scalar_select %p25, %s27, %s18
      %p29 = scmp.ge.s32.totalorder %s28, 2
      %s30 = scalar_select %p29, 0, %s28
      %s31 = ssub.s32 %s18, %s30
      %s32 = ssub.s32 %s19, %s26
      %s33 = sor.u32 %s31, %s32
      %p34 = scmp.eq.s32.totalorder %s33, 0
      %s36 = sadd.s32 %s35, 1
      %s37 = scalar_select %p34, %s35, %s36
      %p40 = pneg %p34
      %p41 = scmp.eq.s32.totalorder %s11, 3
      %p42 = por %p40, %p41
      %p43 = scmp.ne.s32.totalorder %s35, %s38
      %p44 = scmp.eq.s32.totalorder %s11, 0
      %p45 = por %p43, %p44
      %p46 = scmp.ne.s32.totalorder %s35, %s38
      %p47 = scmp.eq.s32.totalorder %s16, 3
      %p48 = por %p46, %p47
      %p49 = scmp.ne.s32.totalorder %s38, %s39
      %p50 = scmp.eq.s32.totalorder %s16, 0
      %p51 = por %p49, %p50
      %p52 = scmp.ne.s32.totalorder %s38, %s39
      %p53 = scmp.eq.s32.totalorder %s17, 3
      %p54 = por %p52, %p53
      %p56 = scmp.ne.s32.totalorder %s39, %s55
      %p57 = scmp.eq.s32.totalorder %s17, 0
      %p58 = por %p56, %p57
      %s60 = sadd.s32 %s59, 1
      %p63 = scmp.eq.s32.totalorder %s11, 3
      %p64 = scmp.ne.s32.totalorder %s59, %s61
      %p65 = scmp.eq.s32.totalorder %s11, 0
      %p66 = por %p64, %p65
      %p67 = scmp.ne.s32.totalorder %s59, %s61
      %p68 = scmp.eq.s32.totalorder %s16, 3
      %p69 = por %p67, %p68
      %p70 = scmp.ne.s32.totalorder %s61, %s62
      %p71 = scmp.eq.s32.totalorder %s16, 0
      %p72 = por %p70, %p71
      %p73 = scmp.ne.s32.totalorder %s61, %s62
      %p74 = scmp.eq.s32.totalorder %s17, 3
      %p75 = por %p73, %p74
      %p77 = scmp.ne.s32.totalorder %s62, %s76
      %p78 = scmp.eq.s32.totalorder %s17, 0
      %p79 = por %p77, %p78
      %s81 = sadd.s32 %s80, 1
      %p84 = scmp.eq.s32.totalorder %s11, 3
      %p85 = scmp.ne.s32.totalorder %s80, %s82
      %p86 = scmp.eq.s32.totalorder %s11, 0
      %p87 = por %p85, %p86
      %p88 = scmp.ne.s32.totalorder %s80, %s82
      %p89 = scmp.eq.s32.totalorder %s16, 3
      %p90 = por %p88, %p89
      %p91 = scmp.ne.s32.totalorder %s82, %s83
      %p92 = scmp.eq.s32.totalorder %s16, 0
      %p93 = por %p91, %p92
      %p94 = scmp.ne.s32.totalorder %s82, %s83
      %p95 = scmp.eq.s32.totalorder %s17, 3
      %p96 = por %p94, %p95
      %p98 = scmp.ne.s32.totalorder %s83, %s97
      %p99 = scmp.eq.s32.totalorder %s17, 0
      %p100 = por %p98, %p99
      %s102 = sadd.s32 %s101, 1
      %p105 = scmp.eq.s32.totalorder %s11, 3
      %p106 = scmp.ne.s32.totalorder %s101, %s103
      %p107 = scmp.eq.s32.totalorder %s11, 0
      %p108 = por %p106, %p107
      %p109 = scmp.ne.s32.totalorder %s101, %s103
      %p110 = scmp.eq.s32.totalorder %s16, 3
      %p111 = por %p109, %p110
      %p112 = scmp.ne.s32.totalorder %s103, %s104
      %p113 = scmp.eq.s32.totalorder %s16, 0
      %p114 = por %p112, %p113
      %p115 = scmp.ne.s32.totalorder %s103, %s104
      %p116 = scmp.eq.s32.totalorder %s17, 3
      %p117 = por %p115, %p116
      %p119 = scmp.ne.s32.totalorder %s104, %s118
      %p120 = scmp.eq.s32.totalorder %s17, 0
      %p121 = por %p119, %p120
      %s123 = sadd.s32 %s122, 1
      %p126 = scmp.eq.s32.totalorder %s11, 3
      %p127 = scmp.ne.s32.totalorder %s122, %s124
      %p128 = scmp.eq.s32.totalorder %s11, 0
      %p129 = por %p127, %p128
      %p130 = scmp.ne.s32.totalorder %s122, %s124
      %p131 = scmp.eq.s32.totalorder %s16, 3
      %p132 = por %p130, %p131
      %p133 = scmp.ne.s32.totalorder %s124, %s125
      %p134 = scmp.eq.s32.totalorder %s16, 0
      %p135 = por %p133, %p134
      %p136 = scmp.ne.s32.totalorder %s124, %s125
      %p137 = scmp.eq.s32.totalorder %s17, 3
      %p138 = por %p136, %p137
      %p140 = scmp.ne.s32.totalorder %s125, %s139
      %p141 = scmp.eq.s32.totalorder %s17, 0
      %p142 = por %p140, %p141
      %s143 = ssub.s32 %s18, %s30
      %p144 = scmp.eq.s32.totalorder %s143, 0
      %s146 = sadd.s32 %s145, 1
      %s147 = scalar_select %p144, %s145, %s146
      %p150 = pneg %p144
      %p151 = scmp.eq.s32.totalorder %s11, 3
      %p152 = por %p150, %p151
      %p153 = scmp.ne.s32.totalorder %s145, %s148
      %p154 = scmp.eq.s32.totalorder %s11, 0
      %p155 = por %p153, %p154
      %p156 = scmp.ne.s32.totalorder %s145, %s148
      %p157 = scmp.eq.s32.totalorder %s16, 3
      %p158 = por %p156, %p157
      %p159 = scmp.ne.s32.totalorder %s148, %s149
      %p160 = scmp.eq.s32.totalorder %s16, 0
      %p161 = por %p159, %p160
      %p162 = scmp.ne.s32.totalorder %s148, %s149
      %p163 = scmp.eq.s32.totalorder %s17, 3
      %p164 = por %p162, %p163
      %p166 = scmp.ne.s32.totalorder %s149, %s165
      %p167 = scmp.eq.s32.totalorder %s17, 0
      %p168 = por %p166, %p167
      %p169 = scmp.le.s32.totalorder 1, %s11
      %p170 = scmp.lt.s32.totalorder %s11, 5
      %p171 = pnand %p169, %p170
      %p172 = pneg %p171
      // Predicated region
      $region9: #{gcn_forward.2} parent=5 // pred_check
        _
      $region10: #{gcn_forward.2} parent=5 // pred_check_branch
        %174 = sbr.rel (%p171) target = $region12
      $region11: #{gcn_forward.2} parent=5 // pred_region
        %s175 = ssub.s32 %s11, 1
        // Predicated region
        $region13: #{gcn_forward.2} parent=11 // pred_check
          %p176 = pneg %p72
        $region14: #{gcn_forward.2} parent=11 // pred_check_branch
          %178 = sbr.rel (%p176) target = $region16
        $region15: #{gcn_forward.2} parent=11 // pred_region
          _
        $region16: #{gcn_forward.2} parent=11 // pred_fallthru
          _
        // Predicated region
        $region17: #{gcn_forward.2} parent=11 // pred_check
          %p179 = pneg %p93
        $region18: #{gcn_forward.2} parent=11 // pred_check_branch
          %181 = sbr.rel (%p179) target = $region20
        $region19: #{gcn_forward.2} parent=11 // pred_region
          _
        $region20: #{gcn_forward.2} parent=11 // pred_fallthru
          _
        // Predicated region
        $region21: #{gcn_forward.2} parent=11 // pred_check
          %p182 = pneg %p114
        $region22: #{gcn_forward.2} parent=11 // pred_check_branch
          %184 = sbr.rel (%p182) target = $region24
        $region23: #{gcn_forward.2} parent=11 // pred_region
          _
        $region24: #{gcn_forward.2} parent=11 // pred_fallthru
          _
        // Predicated region
        $region25: #{gcn_forward.2} parent=11 // pred_check
          %p185 = pneg %p135
        $region26: #{gcn_forward.2} parent=11 // pred_check_branch
          %187 = sbr.rel (%p185) target = $region28
        $region27: #{gcn_forward.2} parent=11 // pred_region
          _
        $region28: #{gcn_forward.2} parent=11 // pred_fallthru
          _
      $region12: #{gcn_forward.2} parent=5 // pred_fallthru
        _
      %p188 = scmp.lt.s32.totalorder %s11, 4
      // Predicated region
      $region29: #{gcn_forward.2} parent=5 // pred_check
        %p189 = pneg %p188
      $region30: #{gcn_forward.2} parent=5 // pred_check_branch
        %191 = sbr.rel (%p189) target = $region32
      $region31: #{gcn_forward.2} parent=5 // pred_region
        // Predicated region
        $region33: #{gcn_forward.2} parent=31 // pred_check
          %p192 = pneg %p45
        $region34: #{gcn_forward.2} parent=31 // pred_check_branch
          %194 = sbr.rel (%p192) target = $region36
        $region35: #{gcn_forward.2} parent=31 // pred_region
          %s195 = sand.u32 %s35, 1
          %s196 = sand.u32 %s35, 1
          %s197 = smul.addr %s196, 64
          %s198 = scalar_lea.vmem [#allocation3], %s197
          %s199 = smul.u32 16, %s18
          %s200 = smul.addr %s199, 2
          %s201 = sadd.s32 %s19, %s200
          %s202 = smul.addr %s201, 4
          %s203 = scalar_lea.vmem %s0, %s202
          // Predicated region
          $region37: #{gcn_forward.2} parent=35 // pred_check
            _
          $region38: #{gcn_forward.2} parent=35 // pred_check_branch
            %205 = sbr.rel (0) target = $region40
          $region39: #{gcn_forward.2} parent=35 // pred_region
            // Predicated region
            $region41: #{gcn_forward.2} parent=39 // pred_check
              _
            $region42: #{gcn_forward.2} parent=39 // pred_check_branch
              %207 = sbr.rel target = $region44
            $region43: #{gcn_forward.2} parent=39 // pred_region
              // Predicated region
              $region56: #{gcn_forward.2} parent=43 // pred_check
                _
              $region57: #{gcn_forward.2} parent=43 // pred_check_branch
                %252 = sbr.rel (0) target = $region59
              $region58: #{gcn_forward.2} parent=43 // pred_region
                loop: start=0, step=1, limit=1
                $region60: #{gcn_forward.2} parent=58 // loop_pre_header
                  _
                $region61: #{gcn_forward.2} parent=58 // loop_header
                  %s254 = sphi 0, %s258
                  %p255 = scmp.ge.s32.totalorder %s254, 1
                  %s259 = sphi %s203, %s203
                  %s260 = sphi %s198, %s198
                $region62: #{gcn_forward.2} parent=58 // loop_header_branch
                  %257 = sbr.rel (%p255) target = $region66
                $region63: #{gcn_forward.2} parent=58 // loop_body
                  _
                $region64: #{gcn_forward.2} parent=58 // loop_footer
                  %s258 = sadd.s32 1, %s254
                $region65: #{gcn_forward.2} parent=58 // loop_footer_branch
                  %253 = sbr.rel target = $region61
                $region66: #{gcn_forward.2} parent=58 // loop_exit
                  _
                loop: start=0, step=1, limit=1
                $region67: #{gcn_forward.2} parent=58 // loop_pre_header
                  _
                $region68: #{gcn_forward.2} parent=58 // loop_header
                  %s263 = sphi 0, %s267
                  %p264 = scmp.ge.s32.totalorder %s263, 1
                  %s268 = sphi %s203, %s203
                  %s269 = sphi %s198, %s198
                $region69: #{gcn_forward.2} parent=58 // loop_header_branch
                  %266 = sbr.rel (%p264) target = $region73
                $region70: #{gcn_forward.2} parent=58 // loop_body
                  %v270 = vld [vmem:[%s268] sm:$0xf]
                  %271 = vst [vmem:[%s269] sm:$0xf] %v270
                  %v272 = vld [vmem:[%s268 + $0x8] sm:$0xf]
                  %273 = vst [vmem:[%s269 + $0x4] sm:$0xf] %v272
                  %v274 = vld [vmem:[%s268 + $0x10] sm:$0xf]
                  %275 = vst [vmem:[%s269 + $0x8] sm:$0xf] %v274
                  %v276 = vld [vmem:[%s268 + $0x18] sm:$0xf]
                  %277 = vst [vmem:[%s269 + $0xc] sm:$0xf] %v276
                  %v278 = vld [vmem:[%s268 + $0x20] sm:$0xf]
                  %279 = vst [vmem:[%s269 + $0x10] sm:$0xf] %v278
                  %v280 = vld [vmem:[%s268 + $0x28] sm:$0xf]
                  %281 = vst [vmem:[%s269 + $0x14] sm:$0xf] %v280
                  %v282 = vld [vmem:[%s268 + $0x30] sm:$0xf]
                  %283 = vst [vmem:[%s269 + $0x18] sm:$0xf] %v282
                  %v284 = vld [vmem:[%s268 + $0x38] sm:$0xf]
                  %285 = vst [vmem:[%s269 + $0x1c] sm:$0xf] %v284
                  %v286 = vld [vmem:[%s268 + $0x40] sm:$0xf]
                  %287 = vst [vmem:[%s269 + $0x20] sm:$0xf] %v286
                  %v288 = vld [vmem:[%s268 + $0x48] sm:$0xf]
                  %289 = vst [vmem:[%s269 + $0x24] sm:$0xf] %v288
                  %v290 = vld [vmem:[%s268 + $0x50] sm:$0xf]
                  %291 = vst [vmem:[%s269 + $0x28] sm:$0xf] %v290
                  %v292 = vld [vmem:[%s268 + $0x58] sm:$0xf]
                  %293 = vst [vmem:[%s269 + $0x2c] sm:$0xf] %v292
                  %v294 = vld [vmem:[%s268 + $0x60] sm:$0xf]
                  %295 = vst [vmem:[%s269 + $0x30] sm:$0xf] %v294
                  %v296 = vld [vmem:[%s268 + $0x68] sm:$0xf]
                  %297 = vst [vmem:[%s269 + $0x34] sm:$0xf] %v296
                  %v298 = vld [vmem:[%s268 + $0x70] sm:$0xf]
                  %299 = vst [vmem:[%s269 + $0x38] sm:$0xf] %v298
                  %v300 = vld [vmem:[%s268 + $0x78] sm:$0xf]
                  %301 = vst [vmem:[%s269 + $0x3c] sm:$0xf] %v300
                $region71: #{gcn_forward.2} parent=58 // loop_footer
                  %s267 = sadd.s32 1, %s263
                $region72: #{gcn_forward.2} parent=58 // loop_footer_branch
                  %262 = sbr.rel target = $region68
                $region73: #{gcn_forward.2} parent=58 // loop_exit
                  _
              $region59: #{gcn_forward.2} parent=43 // pred_fallthru
                _
            $region44: #{gcn_forward.2} parent=39 // pred_fallthru
              _
            // Predicated region
            $region45: #{gcn_forward.2} parent=39 // pred_check
              _
            $region46: #{gcn_forward.2} parent=39 // pred_check_branch
              %209 = sbr.rel (0) target = $region48
            $region47: #{gcn_forward.2} parent=39 // pred_region
              loop: start=0, step=1, limit=1
              $region49: #{gcn_forward.2} parent=47 // loop_pre_header
                _
              $region50: #{gcn_forward.2} parent=47 // loop_header
                %s212 = sphi 0, %s216
                %p213 = scmp.ge.s32.totalorder %s212, 1
                %s217 = sphi %s203, %s203
                %s218 = sphi %s198, %s198
              $region51: #{gcn_forward.2} parent=47 // loop_header_branch
                %215 = sbr.rel (%p213) target = $region55
              $region52: #{gcn_forward.2} parent=47 // loop_body
                %v219 = vld [vmem:[%s217] sm:$0xf]
                %220 = vst [vmem:[%s218] sm:$0xf] %v219
                %v221 = vld [vmem:[%s217 + $0x8] sm:$0xf]
                %222 = vst [vmem:[%s218 + $0x4] sm:$0xf] %v221
                %v223 = vld [vmem:[%s217 + $0x10] sm:$0xf]
                %224 = vst [vmem:[%s218 + $0x8] sm:$0xf] %v223
                %v225 = vld [vmem:[%s217 + $0x18] sm:$0xf]
                %226 = vst [vmem:[%s218 + $0xc] sm:$0xf] %v225
                %v227 = vld [vmem:[%s217 + $0x20] sm:$0xf]
                %228 = vst [vmem:[%s218 + $0x10] sm:$0xf] %v227
                %v229 = vld [vmem:[%s217 + $0x28] sm:$0xf]
                %230 = vst [vmem:[%s218 + $0x14] sm:$0xf] %v229
                %v231 = vld [vmem:[%s217 + $0x30] sm:$0xf]
                %232 = vst [vmem:[%s218 + $0x18] sm:$0xf] %v231
                %v233 = vld [vmem:[%s217 + $0x38] sm:$0xf]
                %234 = vst [vmem:[%s218 + $0x1c] sm:$0xf] %v233
                %v235 = vld [vmem:[%s217 + $0x40] sm:$0xf]
                %236 = vst [vmem:[%s218 + $0x20] sm:$0xf] %v235
                %v237 = vld [vmem:[%s217 + $0x48] sm:$0xf]
                %238 = vst [vmem:[%s218 + $0x24] sm:$0xf] %v237
                %v239 = vld [vmem:[%s217 + $0x50] sm:$0xf]
                %240 = vst [vmem:[%s218 + $0x28] sm:$0xf] %v239
                %v241 = vld [vmem:[%s217 + $0x58] sm:$0xf]
                %242 = vst [vmem:[%s218 + $0x2c] sm:$0xf] %v241
                %v243 = vld [vmem:[%s217 + $0x60] sm:$0xf]
                %244 = vst [vmem:[%s218 + $0x30] sm:$0xf] %v243
                %v245 = vld [vmem:[%s217 + $0x68] sm:$0xf]
                %246 = vst [vmem:[%s218 + $0x34] sm:$0xf] %v245
                %v247 = vld [vmem:[%s217 + $0x70] sm:$0xf]
                %248 = vst [vmem:[%s218 + $0x38] sm:$0xf] %v247
                %v249 = vld [vmem:[%s217 + $0x78] sm:$0xf]
                %250 = vst [vmem:[%s218 + $0x3c] sm:$0xf] %v249
              $region53: #{gcn_forward.2} parent=47 // loop_footer
                %s216 = sadd.s32 1, %s212
              $region54: #{gcn_forward.2} parent=47 // loop_footer_branch
                %211 = sbr.rel target = $region50
              $region55: #{gcn_forward.2} parent=47 // loop_exit
                _
            $region48: #{gcn_forward.2} parent=39 // pred_fallthru
              _
          $region40: #{gcn_forward.2} parent=35 // pred_fallthru
            _
          %302 = vnop
        $region36: #{gcn_forward.2} parent=31 // pred_fallthru
          _
      $region32: #{gcn_forward.2} parent=5 // pred_fallthru
        _
      %p303 = scmp.le.s32.totalorder 1, %s11
      %p304 = scmp.lt.s32.totalorder %s11, 5
      %p305 = pnand %p303, %p304
      %p306 = pneg %p305
      // Predicated region
      $region74: #{gcn_forward.2} parent=5 // pred_check
        _
      $region75: #{gcn_forward.2} parent=5 // pred_check_branch
        %308 = sbr.rel (%p305) target = $region77
      $region76: #{gcn_forward.2} parent=5 // pred_region
        %s309 = ssub.s32 %s11, 1
        %s310 = sand.u32 %s38, 1
        %s311 = sand.u32 %s38, 1
        %s312 = smul.addr %s311, 64
        %s313 = scalar_lea.vmem [#allocation3], %s312
        // Predicated region
        $region78: #{gcn_forward.2} parent=76 // pred_check
          %p314 = pneg %p51
        $region79: #{gcn_forward.2} parent=76 // pred_check_branch
          %316 = sbr.rel (%p314) target = $region81
        $region80: #{gcn_forward.2} parent=76 // pred_region
          _
        $region81: #{gcn_forward.2} parent=76 // pred_fallthru
          _
        %s317 = sand.u32 %s38, 1
        %s318 = sand.u32 %s38, 1
        %s319 = smul.addr %s318, 64
        %s320 = scalar_lea.vmem [#allocation3], %s319
        %p321 = pneg %p51
        %p322 = pneg %p48
        %p323 = pneg %p72
        %p324 = pneg %p69
        %p325 = pneg %p93
        %p326 = pneg %p90
        %p327 = pneg %p114
        %p328 = pneg %p111
        %p329 = pneg %p135
        %p330 = pneg %p132
        %p331 = pneg %p161
        %p332 = pneg %p158
        %s333 = smul.u32 16, %s20
        %p334 = scmp.lt.s32.totalorder %s333, 31
        %s335 = scalar_select %p334, %s333, 31
        %s336 = smul.addr %s335, 4
        %s337 = scalar_lea.vmem %s5, %s336
        %s338 = smul.u32 16, %s20
        %s339 = smul.u32 16, %s20
        %p340 = scmp.lt.s32.totalorder %s339, 31
        %s341 = scalar_select %p340, %s339, 31
        %s342 = smul.addr %s341, 4
        %s343 = scalar_lea.vmem %s5, %s342
        %s344 = smul.u32 16, %s20
        %p346 = scmp.eq.s32.totalorder %s21, 0
        // Predicated region
        $region82: #{gcn_forward.2} parent=76 // pred_check
          %p347 = pneg %p346
        $region83: #{gcn_forward.2} parent=76 // pred_check_branch
          %349 = sbr.rel (%p347) target = $region85
        $region84: #{gcn_forward.2} parent=76 // pred_region
          %350 = vst [vmem:[#allocation2] sm:$0xff] 0.0
          %351 = vst [vmem:[#allocation2 + $0x8] sm:$0xff] 0.0
          %352 = vst [vmem:[#allocation2 + $0x10] sm:$0xff] 0.0
          %353 = vst [vmem:[#allocation2 + $0x18] sm:$0xff] 0.0
          %354 = vst [vmem:[#allocation2 + $0x20] sm:$0xff] 0.0
          %355 = vst [vmem:[#allocation2 + $0x28] sm:$0xff] 0.0
          %356 = vst [vmem:[#allocation2 + $0x30] sm:$0xff] 0.0
          %357 = vst [vmem:[#allocation2 + $0x38] sm:$0xff] 0.0
          %358 = vst [vmem:[#allocation2 + $0x40] sm:$0xff] 0.0
          %359 = vst [vmem:[#allocation2 + $0x48] sm:$0xff] 0.0
          %360 = vst [vmem:[#allocation2 + $0x50] sm:$0xff] 0.0
          %361 = vst [vmem:[#allocation2 + $0x58] sm:$0xff] 0.0
          %362 = vst [vmem:[#allocation2 + $0x60] sm:$0xff] 0.0
          %363 = vst [vmem:[#allocation2 + $0x68] sm:$0xff] 0.0
          %364 = vst [vmem:[#allocation2 + $0x70] sm:$0xff] 0.0
          %365 = vst [vmem:[#allocation2 + $0x78] sm:$0xff] 0.0
        $region85: #{gcn_forward.2} parent=76 // pred_fallthru
          _
        %s366 = smul.u32 %s21, 128
        %s367 = sshra.s32 %s366, 3
        %s368 = sand.u32 %s366, 7
        %s369 = smul.addr %s367, 4
        %s370 = scalar_lea.vmem %s1, %s369
        %v371 = vld [vmem:[%s370] sm:$0xf]
        %v372 = vld [vmem:[%s370 + $0x4] sm:$0xf]
        %v373 = vld [vmem:[%s370 + $0x8] sm:$0xf]
        %v374 = vld [vmem:[%s370 + $0xc] sm:$0xf]
        %v375 = vld [vmem:[%s370 + $0x10] sm:$0xf]
        %v376 = vld [vmem:[%s370 + $0x14] sm:$0xf]
        %v377 = vld [vmem:[%s370 + $0x18] sm:$0xf]
        %v378 = vld [vmem:[%s370 + $0x1c] sm:$0xf]
        %v379 = vld [vmem:[%s370 + $0x20] sm:$0xf]
        %v380 = vld [vmem:[%s370 + $0x24] sm:$0xf]
        %v381 = vld [vmem:[%s370 + $0x28] sm:$0xf]
        %v382 = vld [vmem:[%s370 + $0x2c] sm:$0xf]
        %v383 = vld [vmem:[%s370 + $0x30] sm:$0xf]
        %v384 = vld [vmem:[%s370 + $0x34] sm:$0xf]
        %v385 = vld [vmem:[%s370 + $0x38] sm:$0xf]
        %v386 = vld [vmem:[%s370 + $0x3c] sm:$0xf]
        %v387 = vld [vmem:[%s2] sm:$0xf]
        %v388 = vld [vmem:[%s2 + $0x4] sm:$0xf]
        %v389 = vld [vmem:[%s2 + $0x8] sm:$0xf]
        %v390 = vld [vmem:[%s2 + $0xc] sm:$0xf]
        %v391 = vld [vmem:[%s2 + $0x10] sm:$0xf]
        %v392 = vld [vmem:[%s2 + $0x14] sm:$0xf]
        %v393 = vld [vmem:[%s2 + $0x18] sm:$0xf]
        %v394 = vld [vmem:[%s2 + $0x1c] sm:$0xf]
        %v411 = vunpack.c.l.b16 %v371
        %v412 = vunpack.c.l.b16 %v372
        %v413 = vunpack.c.l.b16 %v373
        %v414 = vunpack.c.l.b16 %v374
        %v415 = vunpack.c.l.b16 %v375
        %v416 = vunpack.c.l.b16 %v376
        %v417 = vunpack.c.l.b16 %v377
        %v418 = vunpack.c.l.b16 %v378
        %v419 = vunpack.c.l.b16 %v379
        %v420 = vunpack.c.l.b16 %v380
        %v421 = vunpack.c.l.b16 %v381
        %v422 = vunpack.c.l.b16 %v382
        %v423 = vunpack.c.l.b16 %v383
        %v424 = vunpack.c.l.b16 %v384
        %v425 = vunpack.c.l.b16 %v385
        %v426 = vunpack.c.l.b16 %v386
        %v427 = vpack.c.b16 %v412, %v411
        %v428 = vpack.c.b16 %v414, %v413
        %v429 = vpack.c.b16 %v416, %v415
        %v430 = vpack.c.b16 %v418, %v417
        %v431 = vpack.c.b16 %v420, %v419
        %v432 = vpack.c.b16 %v422, %v421
        %v433 = vpack.c.b16 %v424, %v423
        %v434 = vpack.c.b16 %v426, %v425
        %v443 = vunpack.c.l.b16 %v387
        %v444 = vunpack.c.l.b16 %v388
        %v445 = vunpack.c.l.b16 %v389
        %v446 = vunpack.c.l.b16 %v390
        %v447 = vunpack.c.l.b16 %v391
        %v448 = vunpack.c.l.b16 %v392
        %v449 = vunpack.c.l.b16 %v393
        %v450 = vunpack.c.l.b16 %v394
        %v451 = vpack.c.b16 %v444, %v443
        %v452 = vpack.c.b16 %v446, %v445
        %v453 = vpack.c.b16 %v448, %v447
        %v454 = vpack.c.b16 %v450, %v449
        %vm459 = vcmask 523264
        %v461 = vsel %vm459, %v427, 0
        %v464 = vsel %vm459, %v428, 0
        %v467 = vsel %vm459, %v429, 0
        %v470 = vsel %vm459, %v430, 0
        %v473 = vsel %vm459, %v431, 0
        %v476 = vsel %vm459, %v432, 0
        %v479 = vsel %vm459, %v433, 0
        %v482 = vsel %vm459, %v434, 0
        %484 = vmatprep.subr.bf16.mxu0 0
        %485 = vmatpush1.bf16.msra.mxu0 %v451
        %486 = vmatprep.subr.bf16.mxu0 0
        %487 = vmatpush1.bf16.msra.mxu0 %v452
        %488 = vmatprep.subr.bf16.mxu0 0
        %489 = vmatpush1.bf16.msra.mxu0 %v453
        %490 = vmatprep.subr.bf16.mxu0 0
        %491 = vmatpush1.bf16.msra.mxu0 %v454
        %492 = vmatprep.subr.bf16.mxu0 0
        %493 = vmatpush1.bf16.msra.mxu0 0
        %494 = vmatprep.subr.bf16.mxu0 0
        %495 = vmatpush1.bf16.msra.mxu0 0
        %496 = vmatprep.subr.bf16.mxu0 0
        %497 = vmatpush1.bf16.msra.mxu0 0
        %498 = vmatprep.subr.bf16.mxu0 0
        %499 = vmatpush1.bf16.msra.mxu0 0
        %500 = vmatprep.subr.bf16.mxu0 0
        %501 = vmatpush1.bf16.msra.mxu0 0
        %502 = vmatprep.subr.bf16.mxu0 0
        %503 = vmatpush1.bf16.msra.mxu0 0
        %504 = vmatprep.subr.bf16.mxu0 0
        %505 = vmatpush1.bf16.msra.mxu0 0
        %506 = vmatprep.subr.bf16.mxu0 0
        %507 = vmatpush1.bf16.msra.mxu0 0
        %508 = vmatprep.subr.bf16.mxu0 0
        %509 = vmatpush1.bf16.msra.mxu0 0
        %510 = vmatprep.subr.bf16.mxu0 0
        %511 = vmatpush1.bf16.msra.mxu0 0
        %512 = vmatprep.subr.bf16.mxu0 0
        %513 = vmatpush1.bf16.msra.mxu0 0
        %514 = vmatprep.subr.bf16.mxu0 0
        %515 = vmatpush1.bf16.msra.mxu0 0
        %516 = vmatprep.mubr.bf16.mxu0 0
        %517 = vmatmul.mubr.bf16.gmra.mrb[0].mxu0 %v461
        %v518 = vpop.f32.mrb[0].mxu0
        %v519 = vadd.f32 0.0, %v518
        %v520 = vpop.f32.mrb[0].mxu0
        %v521 = vpop.f32.mrb[0].mxu0
        %v522 = vadd.f32 0.0, %v521
        %v523 = vpop.f32.mrb[0].mxu0
        %524 = vmatprep.mubr.bf16.mxu0 0
        %525 = vmatmul.mubr.bf16.gmra.mrb[0].mxu0 %v464
        %v526 = vpop.f32.mrb[0].mxu0
        %v527 = vadd.f32 0.0, %v526
        %v528 = vpop.f32.mrb[0].mxu0
        %v529 = vpop.f32.mrb[0].mxu0
        %v530 = vadd.f32 0.0, %v529
        %v531 = vpop.f32.mrb[0].mxu0
        %532 = vmatprep.mubr.bf16.mxu0 0
        %533 = vmatmul.mubr.bf16.gmra.mrb[0].mxu0 %v467
        %v534 = vpop.f32.mrb[0].mxu0
        %v535 = vadd.f32 0.0, %v534
        %v536 = vpop.f32.mrb[0].mxu0
        %v537 = vpop.f32.mrb[0].mxu0
        %v538 = vadd.f32 0.0, %v537
        %v539 = vpop.f32.mrb[0].mxu0
        %540 = vmatprep.mubr.bf16.mxu0 0
        %541 = vmatmul.mubr.bf16.gmra.mrb[0].mxu0 %v470
        %v542 = vpop.f32.mrb[0].mxu0
        %v543 = vadd.f32 0.0, %v542
        %v544 = vpop.f32.mrb[0].mxu0
        %v545 = vpop.f32.mrb[0].mxu0
        %v546 = vadd.f32 0.0, %v545
        %v547 = vpop.f32.mrb[0].mxu0
        %548 = vmatprep.mubr.bf16.mxu0 0
        %549 = vmatmul.mubr.bf16.gmra.mrb[0].mxu0 %v473
        %v550 = vpop.f32.mrb[0].mxu0
        %v551 = vadd.f32 0.0, %v550
        %v552 = vpop.f32.mrb[0].mxu0
        %v553 = vpop.f32.mrb[0].mxu0
        %v554 = vadd.f32 0.0, %v553
        %v555 = vpop.f32.mrb[0].mxu0
        %556 = vmatprep.mubr.bf16.mxu0 0
        %557 = vmatmul.mubr.bf16.gmra.mrb[0].mxu0 %v476
        %v558 = vpop.f32.mrb[0].mxu0
        %v559 = vadd.f32 0.0, %v558
        %v560 = vpop.f32.mrb[0].mxu0
        %v561 = vpop.f32.mrb[0].mxu0
        %v562 = vadd.f32 0.0, %v561
        %v563 = vpop.f32.mrb[0].mxu0
        %564 = vmatprep.mubr.bf16.mxu0 0
        %565 = vmatmul.mubr.bf16.gmra.mrb[0].mxu0 %v479
        %v566 = vpop.f32.mrb[0].mxu0
        %v567 = vadd.f32 0.0, %v566
        %v568 = vpop.f32.mrb[0].mxu0
        %v569 = vpop.f32.mrb[0].mxu0
        %v570 = vadd.f32 0.0, %v569
        %v571 = vpop.f32.mrb[0].mxu0
        %572 = vmatprep.mubr.bf16.mxu0 0
        %573 = vmatmul.mubr.bf16.gmra.mrb[0].mxu0 %v482
        %v574 = vpop.f32.mrb[0].mxu0
        %v575 = vadd.f32 0.0, %v574
        %v576 = vpop.f32.mrb[0].mxu0
        %v577 = vpop.f32.mrb[0].mxu0
        %v578 = vadd.f32 0.0, %v577
        %v579 = vpop.f32.mrb[0].mxu0
        %580 = vdwg.mxu0
        %v581 = vpack.c.bf16 %v522, %v519
        %v582 = vpack.c.bf16 %v530, %v527
        %v583 = vpack.c.bf16 %v538, %v535
        %v584 = vpack.c.bf16 %v546, %v543
        %v585 = vpack.c.bf16 %v554, %v551
        %v586 = vpack.c.bf16 %v562, %v559
        %v587 = vpack.c.bf16 %v570, %v567
        %v588 = vpack.c.bf16 %v578, %v575
        %v589 = vld [vmem:[#allocation2] sm:$0xff]
        %v590 = vld [vmem:[#allocation2 + $0x8] sm:$0xff]
        %v591 = vld [vmem:[#allocation2 + $0x10] sm:$0xff]
        %v592 = vld [vmem:[#allocation2 + $0x18] sm:$0xff]
        %v593 = vld [vmem:[#allocation2 + $0x20] sm:$0xff]
        %v594 = vld [vmem:[#allocation2 + $0x28] sm:$0xff]
        %v595 = vld [vmem:[#allocation2 + $0x30] sm:$0xff]
        %v596 = vld [vmem:[#allocation2 + $0x38] sm:$0xff]
        %v597 = vld [vmem:[#allocation2 + $0x40] sm:$0xff]
        %v598 = vld [vmem:[#allocation2 + $0x48] sm:$0xff]
        %v599 = vld [vmem:[#allocation2 + $0x50] sm:$0xff]
        %v600 = vld [vmem:[#allocation2 + $0x58] sm:$0xff]
        %v601 = vld [vmem:[#allocation2 + $0x60] sm:$0xff]
        %v602 = vld [vmem:[#allocation2 + $0x68] sm:$0xff]
        %v603 = vld [vmem:[#allocation2 + $0x70] sm:$0xff]
        %v604 = vld [vmem:[#allocation2 + $0x78] sm:$0xff]
        %v605 = vld [vmem:[%s313] sm:$0xf]
        %v606 = vld [vmem:[%s313 + $0x4] sm:$0xf]
        %v607 = vld [vmem:[%s313 + $0x8] sm:$0xf]
        %v608 = vld [vmem:[%s313 + $0xc] sm:$0xf]
        %v609 = vld [vmem:[%s313 + $0x10] sm:$0xf]
        %v610 = vld [vmem:[%s313 + $0x14] sm:$0xf]
        %v611 = vld [vmem:[%s313 + $0x18] sm:$0xf]
        %v612 = vld [vmem:[%s313 + $0x1c] sm:$0xf]
        %v613 = vld [vmem:[%s313 + $0x20] sm:$0xf]
        %v614 = vld [vmem:[%s313 + $0x24] sm:$0xf]
        %v615 = vld [vmem:[%s313 + $0x28] sm:$0xf]
        %v616 = vld [vmem:[%s313 + $0x2c] sm:$0xf]
        %v617 = vld [vmem:[%s313 + $0x30] sm:$0xf]
        %v618 = vld [vmem:[%s313 + $0x34] sm:$0xf]
        %v619 = vld [vmem:[%s313 + $0x38] sm:$0xf]
        %v620 = vld [vmem:[%s313 + $0x3c] sm:$0xf]
        %v637 = vunpack.c.l.b16 %v605
        %v638 = vunpack.c.l.b16 %v606
        %v639 = vunpack.c.l.b16 %v607
        %v640 = vunpack.c.l.b16 %v608
        %v641 = vunpack.c.l.b16 %v609
        %v642 = vunpack.c.l.b16 %v610
        %v643 = vunpack.c.l.b16 %v611
        %v644 = vunpack.c.l.b16 %v612
        %v645 = vunpack.c.l.b16 %v613
        %v646 = vunpack.c.l.b16 %v614
        %v647 = vunpack.c.l.b16 %v615
        %v648 = vunpack.c.l.b16 %v616
        %v649 = vunpack.c.l.b16 %v617
        %v650 = vunpack.c.l.b16 %v618
        %v651 = vunpack.c.l.b16 %v619
        %v652 = vunpack.c.l.b16 %v620
        %v653 = vpack.c.b16 %v638, %v637
        %v654 = vpack.c.b16 %v640, %v639
        %v655 = vpack.c.b16 %v642, %v641
        %v656 = vpack.c.b16 %v644, %v643
        %v657 = vpack.c.b16 %v646, %v645
        %v658 = vpack.c.b16 %v648, %v647
        %v659 = vpack.c.b16 %v650, %v649
        %v660 = vpack.c.b16 %v652, %v651
        %669 = vmatprep.subr.bf16.mxu0 0
        %670 = vmatpush1.bf16.msra.mxu0 %v581
        %671 = vmatprep.subr.bf16.mxu0 0
        %672 = vmatpush1.bf16.msra.mxu0 %v582
        %673 = vmatprep.subr.bf16.mxu0 0
        %674 = vmatpush1.bf16.msra.mxu0 %v583
        %675 = vmatprep.subr.bf16.mxu0 0
        %676 = vmatpush1.bf16.msra.mxu0 %v584
        %677 = vmatprep.subr.bf16.mxu0 0
        %678 = vmatpush1.bf16.msra.mxu0 %v585
        %679 = vmatprep.subr.bf16.mxu0 0
        %680 = vmatpush1.bf16.msra.mxu0 %v586
        %681 = vmatprep.subr.bf16.mxu0 0
        %682 = vmatpush1.bf16.msra.mxu0 %v587
        %683 = vmatprep.subr.bf16.mxu0 0
        %684 = vmatpush1.bf16.msra.mxu0 %v588
        %685 = vmatprep.subr.bf16.mxu0 0
        %686 = vmatpush1.bf16.msra.mxu0 0
        %687 = vmatprep.subr.bf16.mxu0 0
        %688 = vmatpush1.bf16.msra.mxu0 0
        %689 = vmatprep.subr.bf16.mxu0 0
        %690 = vmatpush1.bf16.msra.mxu0 0
        %691 = vmatprep.subr.bf16.mxu0 0
        %692 = vmatpush1.bf16.msra.mxu0 0
        %693 = vmatprep.subr.bf16.mxu0 0
        %694 = vmatpush1.bf16.msra.mxu0 0
        %695 = vmatprep.subr.bf16.mxu0 0
        %696 = vmatpush1.bf16.msra.mxu0 0
        %697 = vmatprep.subr.bf16.mxu0 0
        %698 = vmatpush1.bf16.msra.mxu0 0
        %699 = vmatprep.subr.bf16.mxu0 0
        %700 = vmatpush1.bf16.msra.mxu0 0
        %701 = vmatprep.mubr.bf16.mxu0 0
        %702 = vmatmul.mubr.bf16.gmra.mrb[0].mxu0 %v653
        %v703 = vpop.f32.mrb[0].mxu0
        %v704 = vadd.f32 0.0, %v703
        %v705 = vpop.f32.mrb[0].mxu0
        %v706 = vpop.f32.mrb[0].mxu0
        %v707 = vadd.f32 0.0, %v706
        %v708 = vpop.f32.mrb[0].mxu0
        %709 = vmatprep.mubr.bf16.mxu0 0
        %710 = vmatmul.mubr.bf16.gmra.mrb[0].mxu0 %v654
        %v711 = vpop.f32.mrb[0].mxu0
        %v712 = vadd.f32 0.0, %v711
        %v713 = vpop.f32.mrb[0].mxu0
        %v714 = vpop.f32.mrb[0].mxu0
        %v715 = vadd.f32 0.0, %v714
        %v716 = vpop.f32.mrb[0].mxu0
        %717 = vmatprep.mubr.bf16.mxu0 0
        %718 = vmatmul.mubr.bf16.gmra.mrb[0].mxu0 %v655
        %v719 = vpop.f32.mrb[0].mxu0
        %v720 = vadd.f32 0.0, %v719
        %v721 = vpop.f32.mrb[0].mxu0
        %v722 = vpop.f32.mrb[0].mxu0
        %v723 = vadd.f32 0.0, %v722
        %v724 = vpop.f32.mrb[0].mxu0
        %725 = vmatprep.mubr.bf16.mxu0 0
        %726 = vmatmul.mubr.bf16.gmra.mrb[0].mxu0 %v656
        %v727 = vpop.f32.mrb[0].mxu0
        %v728 = vadd.f32 0.0, %v727
        %v729 = vpop.f32.mrb[0].mxu0
        %v730 = vpop.f32.mrb[0].mxu0
        %v731 = vadd.f32 0.0, %v730
        %v732 = vpop.f32.mrb[0].mxu0
        %733 = vmatprep.mubr.bf16.mxu0 0
        %734 = vmatmul.mubr.bf16.gmra.mrb[0].mxu0 %v657
        %v735 = vpop.f32.mrb[0].mxu0
        %v736 = vadd.f32 0.0, %v735
        %v737 = vpop.f32.mrb[0].mxu0
        %v738 = vpop.f32.mrb[0].mxu0
        %v739 = vadd.f32 0.0, %v738
        %v740 = vpop.f32.mrb[0].mxu0
        %741 = vmatprep.mubr.bf16.mxu0 0
        %742 = vmatmul.mubr.bf16.gmra.mrb[0].mxu0 %v658
        %v743 = vpop.f32.mrb[0].mxu0
        %v744 = vadd.f32 0.0, %v743
        %v745 = vpop.f32.mrb[0].mxu0
        %v746 = vpop.f32.mrb[0].mxu0
        %v747 = vadd.f32 0.0, %v746
        %v748 = vpop.f32.mrb[0].mxu0
        %749 = vmatprep.mubr.bf16.mxu0 0
        %750 = vmatmul.mubr.bf16.gmra.mrb[0].mxu0 %v659
        %v751 = vpop.f32.mrb[0].mxu0
        %v752 = vadd.f32 0.0, %v751
        %v753 = vpop.f32.mrb[0].mxu0
        %v754 = vpop.f32.mrb[0].mxu0
        %v755 = vadd.f32 0.0, %v754
        %v756 = vpop.f32.mrb[0].mxu0
        %757 = vmatprep.mubr.bf16.mxu0 0
        %758 = vmatmul.mubr.bf16.gmra.mrb[0].mxu0 %v660
        %v759 = vpop.f32.mrb[0].mxu0
        %v760 = vadd.f32 0.0, %v759
        %v761 = vpop.f32.mrb[0].mxu0
        %v762 = vpop.f32.mrb[0].mxu0
        %v763 = vadd.f32 0.0, %v762
        %v764 = vpop.f32.mrb[0].mxu0
        %765 = vdwg.mxu0
        %v766 = vadd.f32 %v589, %v704
        %v767 = vadd.f32 %v590, %v707
        %v768 = vadd.f32 %v591, %v712
        %v769 = vadd.f32 %v592, %v715
        %v770 = vadd.f32 %v593, %v720
        %v771 = vadd.f32 %v594, %v723
        %v772 = vadd.f32 %v595, %v728
        %v773 = vadd.f32 %v596, %v731
        %v774 = vadd.f32 %v597, %v736
        %v775 = vadd.f32 %v598, %v739
        %v776 = vadd.f32 %v599, %v744
        %v777 = vadd.f32 %v600, %v747
        %v778 = vadd.f32 %v601, %v752
        %v779 = vadd.f32 %v602, %v755
        %v780 = vadd.f32 %v603, %v760
        %v781 = vadd.f32 %v604, %v763
        %782 = vst [vmem:[#allocation2] sm:$0xff] %v766
        %783 = vst [vmem:[#allocation2 + $0x8] sm:$0xff] %v767
        %784 = vst [vmem:[#allocation2 + $0x10] sm:$0xff] %v768
        %785 = vst [vmem:[#allocation2 + $0x18] sm:$0xff] %v769
        %786 = vst [vmem:[#allocation2 + $0x20] sm:$0xff] %v770
        %787 = vst [vmem:[#allocation2 + $0x28] sm:$0xff] %v771
        %788 = vst [vmem:[#allocation2 + $0x30] sm:$0xff] %v772
        %789 = vst [vmem:[#allocation2 + $0x38] sm:$0xff] %v773
        %790 = vst [vmem:[#allocation2 + $0x40] sm:$0xff] %v774
        %791 = vst [vmem:[#allocation2 + $0x48] sm:$0xff] %v775
        %792 = vst [vmem:[#allocation2 + $0x50] sm:$0xff] %v776
        %793 = vst [vmem:[#allocation2 + $0x58] sm:$0xff] %v777
        %794 = vst [vmem:[#allocation2 + $0x60] sm:$0xff] %v778
        %795 = vst [vmem:[#allocation2 + $0x68] sm:$0xff] %v779
        %796 = vst [vmem:[#allocation2 + $0x70] sm:$0xff] %v780
        %797 = vst [vmem:[#allocation2 + $0x78] sm:$0xff] %v781
        %p798 = scmp.eq.s32.totalorder %s21, 1
        // Predicated region
        $region86: #{gcn_forward.2} parent=76 // pred_check
          %p799 = pneg %p798
        $region87: #{gcn_forward.2} parent=76 // pred_check_branch
          %801 = sbr.rel (%p799) target = $region89
        $region88: #{gcn_forward.2} parent=76 // pred_region
          %v802 = vld [vmem:[#allocation2] sm:$0xff]
          %v803 = vld [vmem:[#allocation2 + $0x8] sm:$0xff]
          %v804 = vld [vmem:[#allocation2 + $0x10] sm:$0xff]
          %v805 = vld [vmem:[#allocation2 + $0x18] sm:$0xff]
          %v806 = vld [vmem:[#allocation2 + $0x20] sm:$0xff]
          %v807 = vld [vmem:[#allocation2 + $0x28] sm:$0xff]
          %v808 = vld [vmem:[#allocation2 + $0x30] sm:$0xff]
          %v809 = vld [vmem:[#allocation2 + $0x38] sm:$0xff]
          %v810 = vld [vmem:[#allocation2 + $0x40] sm:$0xff]
          %v811 = vld [vmem:[#allocation2 + $0x48] sm:$0xff]
          %v812 = vld [vmem:[#allocation2 + $0x50] sm:$0xff]
          %v813 = vld [vmem:[#allocation2 + $0x58] sm:$0xff]
          %v814 = vld [vmem:[#allocation2 + $0x60] sm:$0xff]
          %v815 = vld [vmem:[#allocation2 + $0x68] sm:$0xff]
          %v816 = vld [vmem:[#allocation2 + $0x70] sm:$0xff]
          %v817 = vld [vmem:[#allocation2 + $0x78] sm:$0xff]
          %v818 = vld [vmem:[%s3] sm:$0x1]
          %v820 = vlaneseq
          %v821 = vshrl.u32 %v820, 7
          %v822 = vsub.s32 0, %v821
          %v823 = vrot.slane %v818, %v822
          %v825 = vadd.f32 %v802, %v823
          %v826 = vadd.f32 %v803, %v823
          %v827 = vadd.f32 %v804, %v823
          %v828 = vadd.f32 %v805, %v823
          %v829 = vadd.f32 %v806, %v823
          %v830 = vadd.f32 %v807, %v823
          %v831 = vadd.f32 %v808, %v823
          %v832 = vadd.f32 %v809, %v823
          %v833 = vadd.f32 %v810, %v823
          %v834 = vadd.f32 %v811, %v823
          %v835 = vadd.f32 %v812, %v823
          %v836 = vadd.f32 %v813, %v823
          %v837 = vadd.f32 %v814, %v823
          %v838 = vadd.f32 %v815, %v823
          %v839 = vadd.f32 %v816, %v823
          %v840 = vadd.f32 %v817, %v823
          %v841 = vmax.f32 %v825, 0.0
          %v842 = vmax.f32 %v826, 0.0
          %v843 = vmax.f32 %v827, 0.0
          %v844 = vmax.f32 %v828, 0.0
          %v845 = vmax.f32 %v829, 0.0
          %v846 = vmax.f32 %v830, 0.0
          %v847 = vmax.f32 %v831, 0.0
          %v848 = vmax.f32 %v832, 0.0
          %v849 = vmax.f32 %v833, 0.0
          %v850 = vmax.f32 %v834, 0.0
          %v851 = vmax.f32 %v835, 0.0
          %v852 = vmax.f32 %v836, 0.0
          %v853 = vmax.f32 %v837, 0.0
          %v854 = vmax.f32 %v838, 0.0
          %v855 = vmax.f32 %v839, 0.0
          %v856 = vmax.f32 %v840, 0.0
          %v857 = vpack.c.bf16 %v842, %v841
          %v858 = vpack.c.bf16 %v844, %v843
          %v859 = vpack.c.bf16 %v846, %v845
          %v860 = vpack.c.bf16 %v848, %v847
          %v861 = vpack.c.bf16 %v850, %v849
          %v862 = vpack.c.bf16 %v852, %v851
          %v863 = vpack.c.bf16 %v854, %v853
          %v864 = vpack.c.bf16 %v856, %v855
          %v865 = vld [vmem:[%s4] sm:$0xf]
          %v866 = vld [vmem:[%s4 + $0x4] sm:$0xf]
          %v867 = vld [vmem:[%s4 + $0x8] sm:$0xf]
          %v868 = vld [vmem:[%s4 + $0xc] sm:$0xf]
          %v869 = vld [vmem:[%s4 + $0x10] sm:$0xf]
          %v870 = vld [vmem:[%s4 + $0x14] sm:$0xf]
          %v871 = vld [vmem:[%s4 + $0x18] sm:$0xf]
          %v872 = vld [vmem:[%s4 + $0x1c] sm:$0xf]
          %v873 = vld [vmem:[%s4 + $0x20] sm:$0xf]
          %v874 = vld [vmem:[%s4 + $0x24] sm:$0xf]
          %v875 = vld [vmem:[%s4 + $0x28] sm:$0xf]
          %v876 = vld [vmem:[%s4 + $0x2c] sm:$0xf]
          %v877 = vld [vmem:[%s4 + $0x30] sm:$0xf]
          %v878 = vld [vmem:[%s4 + $0x34] sm:$0xf]
          %v879 = vld [vmem:[%s4 + $0x38] sm:$0xf]
          %v880 = vld [vmem:[%s4 + $0x3c] sm:$0xf]
          %v897 = vunpack.c.l.b16 %v865
          %v898 = vunpack.c.l.b16 %v866
          %v899 = vunpack.c.l.b16 %v867
          %v900 = vunpack.c.l.b16 %v868
          %v901 = vunpack.c.l.b16 %v869
          %v902 = vunpack.c.l.b16 %v870
          %v903 = vunpack.c.l.b16 %v871
          %v904 = vunpack.c.l.b16 %v872
          %v905 = vunpack.c.l.b16 %v873
          %v906 = vunpack.c.l.b16 %v874
          %v907 = vunpack.c.l.b16 %v875
          %v908 = vunpack.c.l.b16 %v876
          %v909 = vunpack.c.l.b16 %v877
          %v910 = vunpack.c.l.b16 %v878
          %v911 = vunpack.c.l.b16 %v879
          %v912 = vunpack.c.l.b16 %v880
          %v913 = vpack.c.b16 %v898, %v897
          %v914 = vpack.c.b16 %v900, %v899
          %v915 = vpack.c.b16 %v902, %v901
          %v916 = vpack.c.b16 %v904, %v903
          %v917 = vpack.c.b16 %v906, %v905
          %v918 = vpack.c.b16 %v908, %v907
          %v919 = vpack.c.b16 %v910, %v909
          %v920 = vpack.c.b16 %v912, %v911
          %929 = vmatprep.subr.bf16.mxu0 0
          %930 = vmatpush1.bf16.msra.mxu0 %v913
          %931 = vmatprep.subr.bf16.mxu0 0
          %932 = vmatpush1.bf16.msra.mxu0 %v914
          %933 = vmatprep.subr.bf16.mxu0 0
          %934 = vmatpush1.bf16.msra.mxu0 %v915
          %935 = vmatprep.subr.bf16.mxu0 0
          %936 = vmatpush1.bf16.msra.mxu0 %v916
          %937 = vmatprep.subr.bf16.mxu0 0
          %938 = vmatpush1.bf16.msra.mxu0 %v917
          %939 = vmatprep.subr.bf16.mxu0 0
          %940 = vmatpush1.bf16.msra.mxu0 %v918
          %941 = vmatprep.subr.bf16.mxu0 0
          %942 = vmatpush1.bf16.msra.mxu0 %v919
          %943 = vmatprep.subr.bf16.mxu0 0
          %944 = vmatpush1.bf16.msra.mxu0 %v920
          %945 = vmatprep.subr.bf16.mxu0 0
          %946 = vmatpush1.bf16.msra.mxu0 0
          %947 = vmatprep.subr.bf16.mxu0 0
          %948 = vmatpush1.bf16.msra.mxu0 0
          %949 = vmatprep.subr.bf16.mxu0 0
          %950 = vmatpush1.bf16.msra.mxu0 0
          %951 = vmatprep.subr.bf16.mxu0 0
          %952 = vmatpush1.bf16.msra.mxu0 0
          %953 = vmatprep.subr.bf16.mxu0 0
          %954 = vmatpush1.bf16.msra.mxu0 0
          %955 = vmatprep.subr.bf16.mxu0 0
          %956 = vmatpush1.bf16.msra.mxu0 0
          %957 = vmatprep.subr.bf16.mxu0 0
          %958 = vmatpush1.bf16.msra.mxu0 0
          %959 = vmatprep.subr.bf16.mxu0 0
          %960 = vmatpush1.bf16.msra.mxu0 0
          %961 = vmatprep.mubr.bf16.mxu0 0
          %962 = vmatmul.mubr.bf16.gmra.mrb[0].mxu0 %v857
          %v963 = vpop.f32.mrb[0].mxu0
          %v964 = vadd.f32 0.0, %v963
          %v965 = vpop.f32.mrb[0].mxu0
          %v966 = vpop.f32.mrb[0].mxu0
          %v967 = vadd.f32 0.0, %v966
          %v968 = vpop.f32.mrb[0].mxu0
          %969 = vmatprep.mubr.bf16.mxu0 0
          %970 = vmatmul.mubr.bf16.gmra.mrb[0].mxu0 %v858
          %v971 = vpop.f32.mrb[0].mxu0
          %v972 = vadd.f32 0.0, %v971
          %v973 = vpop.f32.mrb[0].mxu0
          %v974 = vpop.f32.mrb[0].mxu0
          %v975 = vadd.f32 0.0, %v974
          %v976 = vpop.f32.mrb[0].mxu0
          %977 = vmatprep.mubr.bf16.mxu0 0
          %978 = vmatmul.mubr.bf16.gmra.mrb[0].mxu0 %v859
          %v979 = vpop.f32.mrb[0].mxu0
          %v980 = vadd.f32 0.0, %v979
          %v981 = vpop.f32.mrb[0].mxu0
          %v982 = vpop.f32.mrb[0].mxu0
          %v983 = vadd.f32 0.0, %v982
          %v984 = vpop.f32.mrb[0].mxu0
          %985 = vmatprep.mubr.bf16.mxu0 0
          %986 = vmatmul.mubr.bf16.gmra.mrb[0].mxu0 %v860
          %v987 = vpop.f32.mrb[0].mxu0
          %v988 = vadd.f32 0.0, %v987
          %v989 = vpop.f32.mrb[0].mxu0
          %v990 = vpop.f32.mrb[0].mxu0
          %v991 = vadd.f32 0.0, %v990
          %v992 = vpop.f32.mrb[0].mxu0
          %993 = vmatprep.mubr.bf16.mxu0 0
          %994 = vmatmul.mubr.bf16.gmra.mrb[0].mxu0 %v861
          %v995 = vpop.f32.mrb[0].mxu0
          %v996 = vadd.f32 0.0, %v995
          %v997 = vpop.f32.mrb[0].mxu0
          %v998 = vpop.f32.mrb[0].mxu0
          %v999 = vadd.f32 0.0, %v998
          %v1000 = vpop.f32.mrb[0].mxu0
          %1001 = vmatprep.mubr.bf16.mxu0 0
          %1002 = vmatmul.mubr.bf16.gmra.mrb[0].mxu0 %v862
          %v1003 = vpop.f32.mrb[0].mxu0
          %v1004 = vadd.f32 0.0, %v1003
          %v1005 = vpop.f32.mrb[0].mxu0
          %v1006 = vpop.f32.mrb[0].mxu0
          %v1007 = vadd.f32 0.0, %v1006
          %v1008 = vpop.f32.mrb[0].mxu0
          %1009 = vmatprep.mubr.bf16.mxu0 0
          %1010 = vmatmul.mubr.bf16.gmra.mrb[0].mxu0 %v863
          %v1011 = vpop.f32.mrb[0].mxu0
          %v1012 = vadd.f32 0.0, %v1011
          %v1013 = vpop.f32.mrb[0].mxu0
          %v1014 = vpop.f32.mrb[0].mxu0
          %v1015 = vadd.f32 0.0, %v1014
          %v1016 = vpop.f32.mrb[0].mxu0
          %1017 = vmatprep.mubr.bf16.mxu0 0
          %1018 = vmatmul.mubr.bf16.gmra.mrb[0].mxu0 %v864
          %v1019 = vpop.f32.mrb[0].mxu0
          %v1020 = vadd.f32 0.0, %v1019
          %v1021 = vpop.f32.mrb[0].mxu0
          %v1022 = vpop.f32.mrb[0].mxu0
          %v1023 = vadd.f32 0.0, %v1022
          %v1024 = vpop.f32.mrb[0].mxu0
          %1025 = vdwg.mxu0
          %v1026 = vpack.c.bf16 %v967, %v964
          %v1027 = vpack.c.bf16 %v975, %v972
          %v1028 = vpack.c.bf16 %v983, %v980
          %v1029 = vpack.c.bf16 %v991, %v988
          %v1030 = vpack.c.bf16 %v999, %v996
          %v1031 = vpack.c.bf16 %v1007, %v1004
          %v1032 = vpack.c.bf16 %v1015, %v1012
          %v1033 = vpack.c.bf16 %v1023, %v1020
          %v1042 = vunpack.c.l.b16 %v1026
          %v1043 = vunpack.c.h.b16 %v1026
          %v1044 = vunpack.c.l.b16 %v1027
          %v1045 = vunpack.c.h.b16 %v1027
          %v1046 = vunpack.c.l.b16 %v1028
          %v1047 = vunpack.c.h.b16 %v1028
          %v1048 = vunpack.c.l.b16 %v1029
          %v1049 = vunpack.c.h.b16 %v1029
          %v1050 = vunpack.c.l.b16 %v1030
          %v1051 = vunpack.c.h.b16 %v1030
          %v1052 = vunpack.c.l.b16 %v1031
          %v1053 = vunpack.c.h.b16 %v1031
          %v1054 = vunpack.c.l.b16 %v1032
          %v1055 = vunpack.c.h.b16 %v1032
          %v1056 = vunpack.c.l.b16 %v1033
          %v1057 = vunpack.c.h.b16 %v1033
          %v1058 = vpack.c.b16 %v1042, %v1042
          %v1059 = vpack.c.b16 %v1043, %v1043
          %v1060 = vpack.c.b16 %v1044, %v1044
          %v1061 = vpack.c.b16 %v1045, %v1045
          %v1062 = vpack.c.b16 %v1046, %v1046
          %v1063 = vpack.c.b16 %v1047, %v1047
          %v1064 = vpack.c.b16 %v1048, %v1048
          %v1065 = vpack.c.b16 %v1049, %v1049
          %v1066 = vpack.c.b16 %v1050, %v1050
          %v1067 = vpack.c.b16 %v1051, %v1051
          %v1068 = vpack.c.b16 %v1052, %v1052
          %v1069 = vpack.c.b16 %v1053, %v1053
          %v1070 = vpack.c.b16 %v1054, %v1054
          %v1071 = vpack.c.b16 %v1055, %v1055
          %v1072 = vpack.c.b16 %v1056, %v1056
          %v1073 = vpack.c.b16 %v1057, %v1057
          %1090 = vst [vmem:[%s343] sm:$0xf] %v1058
          %1091 = vst [vmem:[%s343 + $0x4] sm:$0xf] %v1059
          %1092 = vst [vmem:[%s343 + $0x8] sm:$0xf] %v1060
          %1093 = vst [vmem:[%s343 + $0xc] sm:$0xf] %v1061
          %1094 = vst [vmem:[%s343 + $0x10] sm:$0xf] %v1062
          %1095 = vst [vmem:[%s343 + $0x14] sm:$0xf] %v1063
          %1096 = vst [vmem:[%s343 + $0x18] sm:$0xf] %v1064
          %1097 = vst [vmem:[%s343 + $0x1c] sm:$0xf] %v1065
          %1098 = vst [vmem:[%s343 + $0x20] sm:$0xf] %v1066
          %1099 = vst [vmem:[%s343 + $0x24] sm:$0xf] %v1067
          %1100 = vst [vmem:[%s343 + $0x28] sm:$0xf] %v1068
          %1101 = vst [vmem:[%s343 + $0x2c] sm:$0xf] %v1069
          %1102 = vst [vmem:[%s343 + $0x30] sm:$0xf] %v1070
          %1103 = vst [vmem:[%s343 + $0x34] sm:$0xf] %v1071
          %1104 = vst [vmem:[%s343 + $0x38] sm:$0xf] %v1072
          %1105 = vst [vmem:[%s343 + $0x3c] sm:$0xf] %v1073
        $region89: #{gcn_forward.2} parent=76 // pred_fallthru
          _
        %s1106 = smul.u32 16, %s20
        %p1107 = scmp.lt.s32.totalorder %s1106, 31
        %s1108 = scalar_select %p1107, %s1106, 31
        %s1109 = smul.addr %s1108, 4
        %s1110 = scalar_lea.vmem %s5, %s1109
        // Predicated region
        $region90: #{gcn_forward.2} parent=76 // pred_check
          %p1111 = pneg %p158
        $region91: #{gcn_forward.2} parent=76 // pred_check_branch
          %1113 = sbr.rel (%p1111) target = $region93
        $region92: #{gcn_forward.2} parent=76 // pred_region
          %s1114 = smul.u32 16, %s20
        $region93: #{gcn_forward.2} parent=76 // pred_fallthru
          _
      $region77: #{gcn_forward.2} parent=5 // pred_fallthru
        _
      %p1115 = scmp.le.s32.totalorder 2, %s11
      // Predicated region
      $region94: #{gcn_forward.2} parent=5 // pred_check
        %p1116 = pneg %p1115
      $region95: #{gcn_forward.2} parent=5 // pred_check_branch
        %1118 = sbr.rel (%p1116) target = $region97
      $region96: #{gcn_forward.2} parent=5 // pred_region
        %s1119 = ssub.s32 %s11, 2
        // Predicated region
        $region98: #{gcn_forward.2} parent=96 // pred_check
          %p1120 = pneg %p164
        $region99: #{gcn_forward.2} parent=96 // pred_check_branch
          %1122 = sbr.rel (%p1120) target = $region101
        $region100: #{gcn_forward.2} parent=96 // pred_region
          %s1123 = smul.u32 16, %s22
          %p1124 = scmp.lt.s32.totalorder %s1123, 31
          %s1125 = scalar_select %p1124, %s1123, 31
          %s1126 = smul.addr %s1125, 4
          %s1127 = scalar_lea.vmem %s5, %s1126
        $region101: #{gcn_forward.2} parent=96 // pred_fallthru
          _
      $region97: #{gcn_forward.2} parent=5 // pred_fallthru
        _
    $region6: #{gcn_forward.2} parent=1 // loop_footer
      %s15 = sadd.s32 1, %s11
    $region7: #{gcn_forward.2} parent=1 // loop_footer_branch
      %10 = sbr.rel target = $region3
    $region8: #{gcn_forward.2} parent=1 // loop_exit
      _

</llo_original>
